<compile_context>
chip_gen: v5e
topology: v5e:2x2
jax: 0.10.0
libtpu: 0.0.40
codegen_flags: <defaults>
</compile_context>

<pallas_src>
import functools

import jax
import jax.numpy as jnp
from jax import lax
from jax.experimental import pallas as pl
from jax.experimental.pallas import tpu as pltpu


def _round_up(x, m):
    return ((x + m - 1) // m) * m


def _device_config():
    """Pick (max node tile, vmem limit) per TPU generation."""
    vmem = 64 << 20
    try:
        info = pltpu.get_tpu_info()
        vmem = getattr(info, "vmem_capacity_bytes", vmem)
    except Exception:
        pass
    if vmem >= (96 << 20):          # v5e / v6e: 128 MiB VMEM per core
        return 1024, 96 << 20
    return 512, 40 << 20            # v7x: 64 MiB VMEM per core


def _graphsage_layer_kernel(adj_ref, xk_ref, xr_ref, invdeg_ref, w_ref, b_ref,
                            out_ref, acc_ref):
    """One mean-pool GraphSAGE layer, tiled over (node-row tiles, adj-K tiles)."""
    k = pl.program_id(1)

    @pl.when(k == 0)
    def _():
        acc_ref[...] = jnp.zeros_like(acc_ref)

    # Neighbor-aggregation partial sum on the MXU (bf16 operands, f32 acc).
    acc_ref[...] += jnp.dot(adj_ref[...], xk_ref[...],
                            preferred_element_type=jnp.float32)

    @pl.when(k == pl.num_programs(1) - 1)
    def _():
        agg = acc_ref[...] * invdeg_ref[...]                  # [TM, D] f32 mean
        # Fused K=2D matmul: [x_row | agg] @ [W_self ; W_neigh].
        feat = jnp.concatenate(
            [xr_ref[...], agg.astype(jnp.bfloat16)], axis=-1)  # [TM, 2D] bf16
        h = jnp.dot(feat, w_ref[...],
                    preferred_element_type=jnp.float32) + b_ref[...]
        h = jnp.maximum(h, 0.0)
        # Row-wise L2 normalization.
        sq = jnp.sum(h * h, axis=-1, keepdims=True)
        out_ref[...] = h * lax.rsqrt(jnp.maximum(sq, 1e-12))


def _graphsage_layer(adj_bf16, x_bf16, inv_deg, w, b, *, tile, vmem_limit):
    n_pad, d_pad = x_bf16.shape
    tm = tk = tile
    grid = (n_pad // tm, n_pad // tk)
    return pl.pallas_call(
        _graphsage_layer_kernel,
        out_shape=jax.ShapeDtypeStruct((n_pad, d_pad), jnp.float32),
        grid_spec=pltpu.PrefetchScalarGridSpec(
            num_scalar_prefetch=0,
            grid=grid,
            in_specs=[
                pl.BlockSpec((tm, tk), lambda i, k: (i, k)),        # adj tile
                pl.BlockSpec((tk, d_pad), lambda i, k: (k, 0)),     # x K-tile
                pl.BlockSpec((tm, d_pad), lambda i, k: (i, 0)),     # x row-tile
                pl.BlockSpec((tm, 1), lambda i, k: (i, 0)),         # inv_deg
                pl.BlockSpec((2 * d_pad, d_pad), lambda i, k: (0, 0)),  # W stack
                pl.BlockSpec((1, d_pad), lambda i, k: (0, 0)),      # bias
            ],
            out_specs=pl.BlockSpec((tm, d_pad), lambda i, k: (i, 0)),
            scratch_shapes=[pltpu.VMEM((tm, d_pad), jnp.float32)],
        ),
        compiler_params=pltpu.CompilerParams(
            dimension_semantics=("parallel", "arbitrary"),
            vmem_limit_bytes=vmem_limit,
        ),
    )(adj_bf16, x_bf16, x_bf16, inv_deg, w, b)


@functools.partial(jax.jit,
                   static_argnames=("n_pad", "d_pad", "tile", "vmem_limit"))
def _forward_impl(x, adj, w_stack, b_stack, *, n_pad, d_pad, tile, vmem_limit):
    n, d = x.shape
    # Pad adjacency / features once (zero rows & cols are inert).
    if n_pad != n:
        adj = jnp.zeros((n_pad, n_pad), jnp.float32).at[:n, :n].set(adj)
    if n_pad != n or d_pad != d:
        x = jnp.zeros((n_pad, d_pad), jnp.float32).at[:n, :d].set(x)
    # inv_deg computed once (adj is constant across layers and K-tiled inside).
    inv_deg = 1.0 / jnp.maximum(jnp.sum(adj, axis=-1, keepdims=True), 1.0)
    adj_bf = adj.astype(jnp.bfloat16)                # 0/1 -> exact in bf16

    h = x
    depth = w_stack.shape[0]
    for layer in range(depth):
        h = _graphsage_layer(adj_bf, h.astype(jnp.bfloat16), inv_deg,
                             w_stack[layer], b_stack[layer],
                             tile=tile, vmem_limit=vmem_limit)
    return h


def graphsage_forward(x, adj, params, pooling_type="mean"):
    """Mirrors GraphSage.forward: sequentially apply each GraphSageLayer."""
    assert pooling_type == "mean"    # TODO(synk): 'max' pooling not implemented
    tile_cap, vmem_limit = _device_config()

    n, d = x.shape
    d_pad = _round_up(d, 128)
    tile = min(tile_cap, _round_up(n, 128))
    n_pad = _round_up(n, tile)

    # Stack [W_self ; W_neigh] per layer (padded to d_pad) once, in bf16.
    w_list, b_list = [], []
    for (w_self, w_neigh, b) in params:
        ws = jnp.zeros((d_pad, d_pad), jnp.float32).at[:d, :d].set(w_self)
        wn = jnp.zeros((d_pad, d_pad), jnp.float32).at[:d, :d].set(w_neigh)
        w_list.append(jnp.concatenate([ws, wn], axis=0))
        b_list.append(jnp.zeros((1, d_pad), jnp.float32).at[:, :d].set(b))
    w_stack = jnp.stack(w_list).astype(jnp.bfloat16)    # [depth, 2*d_pad, d_pad]
    b_stack = jnp.stack(b_list)                          # [depth, 1, d_pad] f32

    out = _forward_impl(x, adj, w_stack, b_stack,
                        n_pad=n_pad, d_pad=d_pad, tile=tile,
                        vmem_limit=vmem_limit)
    return out[:n, :d]


def init_params(key, depth, dimension):
    params = []
    for _ in range(depth):
        k1, k2, key = jax.random.split(key, 3)
        scale = 1.0 / jnp.sqrt(jnp.float32(dimension))
        w_self = jax.random.normal(k1, (dimension, dimension), jnp.float32) * scale
        w_neigh = jax.random.normal(k2, (dimension, dimension), jnp.float32) * scale
        b = jnp.zeros((1, dimension), jnp.float32)
        params.append((w_self, w_neigh, b))
    return params


def _reference(x, adj, params):
    """Pure-JAX f32 reference for sanity checking."""
    h = x
    for (w_self, w_neigh, b) in params:
        deg = jnp.maximum(jnp.sum(adj, axis=-1, keepdims=True), 1.0)
        agg = (adj @ h) / deg
        o = jnp.maximum(h @ w_self + agg @ w_neigh + b, 0.0)
        h = o * lax.rsqrt(jnp.maximum(jnp.sum(o * o, -1, keepdims=True), 1e-12))
    return h


if __name__ == "__main__":
    depth = 2
    dimension = 128   # feature dim (lane-friendly)
    num_nodes = 64    # padded to 128 rows inside the wrapper

    key = jax.random.PRNGKey(0)
    kx, kadj, kp = jax.random.split(key, 3)

    x = jax.random.normal(kx, (num_nodes, dimension), jnp.float32)
    # Random symmetric 0/1 adjacency.
    a = (jax.random.uniform(kadj, (num_nodes, num_nodes)) < 0.1).astype(jnp.float32)
    adj = jnp.maximum(a, a.T)

    params = init_params(kp, depth, dimension)

    out = graphsage_forward(x, adj, params, pooling_type="mean")
    out = jax.block_until_ready(out)

    ref = _reference(x, adj, params)
    assert out.shape == (num_nodes, dimension)
    # bf16 MXU operands (f32 accumulation) -> slightly looser tolerance than f32.
    assert jnp.allclose(out, ref, atol=5e-2, rtol=5e-2), (
        float(jnp.max(jnp.abs(out - ref))))

    print("KERNEL_OK")
</pallas_src>

<mosaic_0001>
module attributes {stable_mosaic.version = 11 : i64} {
  func.func @_graphsage_layer_kernel(%arg0: i32, %arg1: i32, %arg2: memref<128x128xbf16, #tpu.memory_space<vmem>>, %arg3: memref<128x128xbf16, #tpu.memory_space<vmem>>, %arg4: memref<128x128xbf16, #tpu.memory_space<vmem>>, %arg5: memref<128x1xf32, #tpu.memory_space<vmem>>, %arg6: memref<256x128xbf16, #tpu.memory_space<vmem>>, %arg7: memref<1x128xf32, #tpu.memory_space<vmem>>, %arg8: memref<128x128xf32, #tpu.memory_space<vmem>>, %arg9: memref<128x128xf32, #tpu.memory_space<vmem>>) attributes {dimension_semantics = [#tpu.dimension_semantics<parallel>, #tpu.dimension_semantics<arbitrary>], iteration_bounds = array<i64: 1, 1>, scalar_prefetch = 0 : i64, scratch_operands = 1 : i64, tpu.core_type = #tpu.core_type<tc>, window_params = [{transform_indices = @transform_0, window_bounds = array<i64: 128, 128>}, {transform_indices = @transform_1, window_bounds = array<i64: 128, 128>}, {transform_indices = @transform_2, window_bounds = array<i64: 128, 128>}, {transform_indices = @transform_3, window_bounds = array<i64: 128, 1>}, {pipeline_mode = #tpu.pipeline_mode<synchronous>, transform_indices = @transform_4, window_bounds = array<i64: 256, 128>}, {pipeline_mode = #tpu.pipeline_mode<synchronous>, transform_indices = @transform_5, window_bounds = array<i64: 1, 128>}, {transform_indices = @transform_6, window_bounds = array<i64: 128, 128>}]} {
    %c0_i32 = arith.constant 0 : i32
    %0 = arith.cmpi eq, %arg1, %c0_i32 : i32
    %1 = arith.extui %0 : i1 to i32
    %c0_i32_0 = arith.constant 0 : i32
    %2 = arith.cmpi ne, %1, %c0_i32_0 : i32
    scf.if %2 {
      %cst_10 = arith.constant 0.000000e+00 : f32
      %12 = vector.broadcast %cst_10 : f32 to vector<128x128xf32>
      %c0_11 = arith.constant 0 : index
      %c0_12 = arith.constant 0 : index
      %13 = vector.load %arg9[%c0_11, %c0_12] : memref<128x128xf32, #tpu.memory_space<vmem>>, vector<128x128xf32>
      tpu.vector_store %arg9[%c0_11, %c0_12], %12 {strides = array<i32>} : memref<128x128xf32, #tpu.memory_space<vmem>>, vector<128x128xf32>,
    } else {
    }
    %c0 = arith.constant 0 : index
    %c0_1 = arith.constant 0 : index
    %3 = vector.load %arg9[%c0, %c0_1] : memref<128x128xf32, #tpu.memory_space<vmem>>, vector<128x128xf32>
    %c0_2 = arith.constant 0 : index
    %c0_3 = arith.constant 0 : index
    %4 = vector.load %arg2[%c0_2, %c0_3] : memref<128x128xbf16, #tpu.memory_space<vmem>>, vector<128x128xbf16>
    %c0_4 = arith.constant 0 : index
    %c0_5 = arith.constant 0 : index
    %5 = vector.load %arg3[%c0_4, %c0_5] : memref<128x128xbf16, #tpu.memory_space<vmem>>, vector<128x128xbf16>
    %cst = arith.constant dense<0.000000e+00> : vector<128x128xf32>
    %6 = tpu.matmul %4, %5, %cst {dimension_numbers = #tpu.dot_dimension_numbers<[1], [0], [0], [1], [0, 0, 1, 1], [], []>} : vector<128x128xbf16>, vector<128x128xbf16>, vector<128x128xf32> -> vector<128x128xf32>
    %7 = arith.addf %3, %6 : vector<128x128xf32>
    %c0_6 = arith.constant 0 : index
    %c0_7 = arith.constant 0 : index
    %8 = vector.load %arg9[%c0_6, %c0_7] : memref<128x128xf32, #tpu.memory_space<vmem>>, vector<128x128xf32>
    tpu.vector_store %arg9[%c0_6, %c0_7], %7 {strides = array<i32>} : memref<128x128xf32, #tpu.memory_space<vmem>>, vector<128x128xf32>,
    %c0_i32_8 = arith.constant 0 : i32
    %9 = arith.cmpi eq, %arg1, %c0_i32_8 : i32
    %10 = arith.extui %9 : i1 to i32
    %c0_i32_9 = arith.constant 0 : i32
    %11 = arith.cmpi ne, %10, %c0_i32_9 : i32
    scf.if %11 {
      %c0_10 = arith.constant 0 : index
      %c0_11 = arith.constant 0 : index
      %12 = vector.load %arg9[%c0_10, %c0_11] : memref<128x128xf32, #tpu.memory_space<vmem>>, vector<128x128xf32>
      %c0_12 = arith.constant 0 : index
      %c0_13 = arith.constant 0 : index
      %13 = vector.load %arg5[%c0_12, %c0_13] : memref<128x1xf32, #tpu.memory_space<vmem>>, vector<128x1xf32>
      %14 = vector.broadcast %13 : vector<128x1xf32> to vector<128x128xf32>
      %15 = arith.mulf %12, %14 : vector<128x128xf32>
      %c0_14 = arith.constant 0 : index
      %c0_15 = arith.constant 0 : index
      %16 = vector.load %arg4[%c0_14, %c0_15] : memref<128x128xbf16, #tpu.memory_space<vmem>>, vector<128x128xbf16>
      %17 = arith.truncf %15 : vector<128x128xf32> to vector<128x128xbf16>
      %18 = tpu.concatenate %16, %17 in 1 : vector<128x128xbf16>, vector<128x128xbf16> -> vector<128x256xbf16>
      %c0_16 = arith.constant 0 : index
      %c0_17 = arith.constant 0 : index
      %19 = vector.load %arg6[%c0_16, %c0_17] : memref<256x128xbf16, #tpu.memory_space<vmem>>, vector<256x128xbf16>
      %cst_18 = arith.constant dense<0.000000e+00> : vector<128x128xf32>
      %20 = tpu.matmul %18, %19, %cst_18 {dimension_numbers = #tpu.dot_dimension_numbers<[1], [0], [0], [1], [0, 0, 1, 1], [], []>} : vector<128x256xbf16>, vector<256x128xbf16>, vector<128x128xf32> -> vector<128x128xf32>
      %c0_19 = arith.constant 0 : index
      %c0_20 = arith.constant 0 : index
      %21 = vector.load %arg7[%c0_19, %c0_20] : memref<1x128xf32, #tpu.memory_space<vmem>>, vector<1x128xf32>
      %22 = vector.broadcast %21 : vector<1x128xf32> to vector<128x128xf32>
      %23 = arith.addf %20, %22 : vector<128x128xf32>
      %cst_21 = arith.constant 0.000000e+00 : f32
      %24 = vector.broadcast %cst_21 : f32 to vector<128x128xf32>
      %25 = arith.maximumf %23, %24 : vector<128x128xf32>
      %26 = arith.mulf %25, %25 : vector<128x128xf32>
      %cst_22 = arith.constant dense<0.000000e+00> : vector<128xf32>
      %27 = vector.multi_reduction <add>, %26, %cst_22 [1] : vector<128x128xf32> to vector<128xf32>
      %28 = vector.shape_cast %27 : vector<128xf32> to vector<128x1xf32>
      %cst_23 = arith.constant 9.99999996E-13 : f32
      %29 = vector.broadcast %cst_23 : f32 to vector<128x1xf32>
      %30 = arith.maximumf %28, %29 : vector<128x1xf32>
      %31 = math.rsqrt %30 : vector<128x1xf32>
      %32 = vector.broadcast %31 : vector<128x1xf32> to vector<128x128xf32>
      %33 = arith.mulf %25, %32 : vector<128x128xf32>
      %c0_24 = arith.constant 0 : index
      %c0_25 = arith.constant 0 : index
      %34 = vector.load %arg8[%c0_24, %c0_25] : memref<128x128xf32, #tpu.memory_space<vmem>>, vector<128x128xf32>
      tpu.vector_store %arg8[%c0_24, %c0_25], %33 {strides = array<i32>} : memref<128x128xf32, #tpu.memory_space<vmem>>, vector<128x128xf32>,
    } else {
    }
    return
  }
  func.func @transform_0(%arg0: i32, %arg1: i32) -> (i32, i32) {
    %c0_i32 = arith.constant 0 : i32
    return %arg0, %arg1 : i32, i32
  }
  func.func @transform_1(%arg0: i32, %arg1: i32) -> (i32, i32) {
    %c0_i32 = arith.constant 0 : i32
    %c0_i32_0 = arith.constant 0 : i32
    return %arg1, %c0_i32 : i32, i32
  }
  func.func @transform_2(%arg0: i32, %arg1: i32) -> (i32, i32) {
    %c0_i32 = arith.constant 0 : i32
    %c0_i32_0 = arith.constant 0 : i32
    return %arg0, %c0_i32 : i32, i32
  }
  func.func @transform_3(%arg0: i32, %arg1: i32) -> (i32, i32) {
    %c0_i32 = arith.constant 0 : i32
    %c0_i32_0 = arith.constant 0 : i32
    return %arg0, %c0_i32 : i32, i32
  }
  func.func @transform_4(%arg0: i32, %arg1: i32) -> (i32, i32) {
    %c0_i32 = arith.constant 0 : i32
    %c0_i32_0 = arith.constant 0 : i32
    %c0_i32_1 = arith.constant 0 : i32
    return %c0_i32, %c0_i32_0 : i32, i32
  }
  func.func @transform_5(%arg0: i32, %arg1: i32) -> (i32, i32) {
    %c0_i32 = arith.constant 0 : i32
    %c0_i32_0 = arith.constant 0 : i32
    %c0_i32_1 = arith.constant 0 : i32
    return %c0_i32, %c0_i32_0 : i32, i32
  }
  func.func @transform_6(%arg0: i32, %arg1: i32) -> (i32, i32) {
    %c0_i32 = arith.constant 0 : i32
    %c0_i32_0 = arith.constant 0 : i32
    return %arg0, %c0_i32 : i32, i32
  }
}

module attributes {stable_mosaic.version = 11 : i64} {
  func.func @_graphsage_layer_kernel(%arg0: i32, %arg1: i32, %arg2: memref<128x128xbf16, #tpu.memory_space<vmem>>, %arg3: memref<128x128xbf16, #tpu.memory_space<vmem>>, %arg4: memref<128x128xbf16, #tpu.memory_space<vmem>>, %arg5: memref<128x1xf32, #tpu.memory_space<vmem>>, %arg6: memref<256x128xbf16, #tpu.memory_space<vmem>>, %arg7: memref<1x128xf32, #tpu.memory_space<vmem>>, %arg8: memref<128x128xf32, #tpu.memory_space<vmem>>, %arg9: memref<128x128xf32, #tpu.memory_space<vmem>>) attributes {dimension_semantics = [#tpu.dimension_semantics<parallel>, #tpu.dimension_semantics<arbitrary>], iteration_bounds = array<i64: 1, 1>, scalar_prefetch = 0 : i64, scratch_operands = 1 : i64, tpu.core_type = #tpu.core_type<tc>, window_params = [{transform_indices = @transform_0, window_bounds = array<i64: 128, 128>}, {transform_indices = @transform_1, window_bounds = array<i64: 128, 128>}, {transform_indices = @transform_2, window_bounds = array<i64: 128, 128>}, {transform_indices = @transform_3, window_bounds = array<i64: 128, 1>}, {pipeline_mode = #tpu.pipeline_mode<synchronous>, transform_indices = @transform_4, window_bounds = array<i64: 256, 128>}, {pipeline_mode = #tpu.pipeline_mode<synchronous>, transform_indices = @transform_5, window_bounds = array<i64: 1, 128>}, {transform_indices = @transform_6, window_bounds = array<i64: 128, 128>}]} {
    %c0_i32 = arith.constant 0 : i32
    %0 = arith.cmpi eq, %arg1, %c0_i32 : i32
    %1 = arith.extui %0 : i1 to i32
    %c0_i32_0 = arith.constant 0 : i32
    %2 = arith.cmpi ne, %1, %c0_i32_0 : i32
    scf.if %2 {
      %cst_10 = arith.constant 0.000000e+00 : f32
      %12 = vector.broadcast %cst_10 : f32 to vector<128x128xf32>
      %c0_11 = arith.constant 0 : index
      %c0_12 = arith.constant 0 : index
      %13 = vector.load %arg9[%c0_11, %c0_12] : memref<128x128xf32, #tpu.memory_space<vmem>>, vector<128x128xf32>
      tpu.vector_store %arg9[%c0_11, %c0_12], %12 {strides = array<i32>} : memref<128x128xf32, #tpu.memory_space<vmem>>, vector<128x128xf32>,
    } else {
    }
    %c0 = arith.constant 0 : index
    %c0_1 = arith.constant 0 : index
    %3 = vector.load %arg9[%c0, %c0_1] : memref<128x128xf32, #tpu.memory_space<vmem>>, vector<128x128xf32>
    %c0_2 = arith.constant 0 : index
    %c0_3 = arith.constant 0 : index
    %4 = vector.load %arg2[%c0_2, %c0_3] : memref<128x128xbf16, #tpu.memory_space<vmem>>, vector<128x128xbf16>
    %c0_4 = arith.constant 0 : index
    %c0_5 = arith.constant 0 : index
    %5 = vector.load %arg3[%c0_4, %c0_5] : memref<128x128xbf16, #tpu.memory_space<vmem>>, vector<128x128xbf16>
    %cst = arith.constant dense<0.000000e+00> : vector<128x128xf32>
    %6 = tpu.matmul %4, %5, %cst {dimension_numbers = #tpu.dot_dimension_numbers<[1], [0], [0], [1], [0, 0, 1, 1], [], []>} : vector<128x128xbf16>, vector<128x128xbf16>, vector<128x128xf32> -> vector<128x128xf32>
    %7 = arith.addf %3, %6 : vector<128x128xf32>
    %c0_6 = arith.constant 0 : index
    %c0_7 = arith.constant 0 : index
    %8 = vector.load %arg9[%c0_6, %c0_7] : memref<128x128xf32, #tpu.memory_space<vmem>>, vector<128x128xf32>
    tpu.vector_store %arg9[%c0_6, %c0_7], %7 {strides = array<i32>} : memref<128x128xf32, #tpu.memory_space<vmem>>, vector<128x128xf32>,
    %c0_i32_8 = arith.constant 0 : i32
    %9 = arith.cmpi eq, %arg1, %c0_i32_8 : i32
    %10 = arith.extui %9 : i1 to i32
    %c0_i32_9 = arith.constant 0 : i32
    %11 = arith.cmpi ne, %10, %c0_i32_9 : i32
    scf.if %11 {
      %c0_10 = arith.constant 0 : index
      %c0_11 = arith.constant 0 : index
      %12 = vector.load %arg9[%c0_10, %c0_11] : memref<128x128xf32, #tpu.memory_space<vmem>>, vector<128x128xf32>
      %c0_12 = arith.constant 0 : index
      %c0_13 = arith.constant 0 : index
      %13 = vector.load %arg5[%c0_12, %c0_13] : memref<128x1xf32, #tpu.memory_space<vmem>>, vector<128x1xf32>
      %14 = vector.broadcast %13 : vector<128x1xf32> to vector<128x128xf32>
      %15 = arith.mulf %12, %14 : vector<128x128xf32>
      %c0_14 = arith.constant 0 : index
      %c0_15 = arith.constant 0 : index
      %16 = vector.load %arg4[%c0_14, %c0_15] : memref<128x128xbf16, #tpu.memory_space<vmem>>, vector<128x128xbf16>
      %17 = arith.truncf %15 : vector<128x128xf32> to vector<128x128xbf16>
      %18 = tpu.concatenate %16, %17 in 1 : vector<128x128xbf16>, vector<128x128xbf16> -> vector<128x256xbf16>
      %c0_16 = arith.constant 0 : index
      %c0_17 = arith.constant 0 : index
      %19 = vector.load %arg6[%c0_16, %c0_17] : memref<256x128xbf16, #tpu.memory_space<vmem>>, vector<256x128xbf16>
      %cst_18 = arith.constant dense<0.000000e+00> : vector<128x128xf32>
      %20 = tpu.matmul %18, %19, %cst_18 {dimension_numbers = #tpu.dot_dimension_numbers<[1], [0], [0], [1], [0, 0, 1, 1], [], []>} : vector<128x256xbf16>, vector<256x128xbf16>, vector<128x128xf32> -> vector<128x128xf32>
      %c0_19 = arith.constant 0 : index
      %c0_20 = arith.constant 0 : index
      %21 = vector.load %arg7[%c0_19, %c0_20] : memref<1x128xf32, #tpu.memory_space<vmem>>, vector<1x128xf32>
      %22 = vector.broadcast %21 : vector<1x128xf32> to vector<128x128xf32>
      %23 = arith.addf %20, %22 : vector<128x128xf32>
      %cst_21 = arith.constant 0.000000e+00 : f32
      %24 = vector.broadcast %cst_21 : f32 to vector<128x128xf32>
      %25 = arith.maximumf %23, %24 : vector<128x128xf32>
      %26 = arith.mulf %25, %25 : vector<128x128xf32>
      %cst_22 = arith.constant dense<0.000000e+00> : vector<128xf32>
      %27 = vector.multi_reduction <add>, %26, %cst_22 [1] : vector<128x128xf32> to vector<128xf32>
      %28 = vector.shape_cast %27 : vector<128xf32> to vector<128x1xf32>
      %cst_23 = arith.constant 9.99999996E-13 : f32
      %29 = vector.broadcast %cst_23 : f32 to vector<128x1xf32>
      %30 = arith.maximumf %28, %29 : vector<128x1xf32>
      %31 = math.rsqrt %30 : vector<128x1xf32>
      %32 = vector.broadcast %31 : vector<128x1xf32> to vector<128x128xf32>
      %33 = arith.mulf %25, %32 : vector<128x128xf32>
      %c0_24 = arith.constant 0 : index
      %c0_25 = arith.constant 0 : index
      %34 = vector.load %arg8[%c0_24, %c0_25] : memref<128x128xf32, #tpu.memory_space<vmem>>, vector<128x128xf32>
      tpu.vector_store %arg8[%c0_24, %c0_25], %33 {strides = array<i32>} : memref<128x128xf32, #tpu.memory_space<vmem>>, vector<128x128xf32>,
    } else {
    }
    return
  }
  func.func @transform_0(%arg0: i32, %arg1: i32) -> (i32, i32) {
    %c0_i32 = arith.constant 0 : i32
    return %arg0, %arg1 : i32, i32
  }
  func.func @transform_1(%arg0: i32, %arg1: i32) -> (i32, i32) {
    %c0_i32 = arith.constant 0 : i32
    %c0_i32_0 = arith.constant 0 : i32
    return %arg1, %c0_i32 : i32, i32
  }
  func.func @transform_2(%arg0: i32, %arg1: i32) -> (i32, i32) {
    %c0_i32 = arith.constant 0 : i32
    %c0_i32_0 = arith.constant 0 : i32
    return %arg0, %c0_i32 : i32, i32
  }
  func.func @transform_3(%arg0: i32, %arg1: i32) -> (i32, i32) {
    %c0_i32 = arith.constant 0 : i32
    %c0_i32_0 = arith.constant 0 : i32
    return %arg0, %c0_i32 : i32, i32
  }
  func.func @transform_4(%arg0: i32, %arg1: i32) -> (i32, i32) {
    %c0_i32 = arith.constant 0 : i32
    %c0_i32_0 = arith.constant 0 : i32
    %c0_i32_1 = arith.constant 0 : i32
    return %c0_i32, %c0_i32_0 : i32, i32
  }
  func.func @transform_5(%arg0: i32, %arg1: i32) -> (i32, i32) {
    %c0_i32 = arith.constant 0 : i32
    %c0_i32_0 = arith.constant 0 : i32
    %c0_i32_1 = arith.constant 0 : i32
    return %c0_i32, %c0_i32_0 : i32, i32
  }
  func.func @transform_6(%arg0: i32, %arg1: i32) -> (i32, i32) {
    %c0_i32 = arith.constant 0 : i32
    %c0_i32_0 = arith.constant 0 : i32
    return %arg0, %c0_i32 : i32, i32
  }
}

</mosaic_0001>

<llo_original>
// kernel: _forward_impl.2
$region0: #{_forward_impl.2}
  #allocation0 [shape = 'u32[]', space=smem, size = 0x4, offset = 0x4, fixed_abs, tag = 'smem constant byte address 0x4 - core index']
  #allocation1 [shape = 'u32[72,128]{1,0:T(1,128)}', space=vmem, size = 0x9000, scoped, tag = 'internal scratch']
  #allocation2 [shape = 'f32[128,128]{1,0:T(8,128)}', space=vmem, size = 0x10000, scoped, tag = 'scratch operand']
  %s0 = inlined_call_operand.vmem [shape: bf16[128,128], index: 0, kind: input, shape index: {}]
  %s1 = inlined_call_operand.vmem [shape: bf16[128,128], index: 1, kind: input, shape index: {}, may-alias: {1,2}]
  %s2 = inlined_call_operand.vmem [shape: bf16[128,128], index: 2, kind: input, shape index: {}, may-alias: {1,2}]
  %s3 = inlined_call_operand.vmem [shape: f32[128,1], index: 3, kind: input, shape index: {}]
  %s4 = inlined_call_operand.vmem [shape: bf16[256,128], index: 4, kind: input, shape index: {}]
  %s5 = inlined_call_operand.vmem [shape: f32[1,128], index: 5, kind: input, shape index: {}]
  %s6 = inlined_call_operand.vmem [shape: f32[128,128], index: 6, kind: output, shape index: {}]
  %s7 = sld [smem:[#allocation0]]
  $region42: #{_forward_impl.2} parent=0
    _
  %s9 = ssub.s32 1, %s7
  %s10 = scalar_select 0, %s9, %s7
  // Predicated region
  $region2: #{_forward_impl.2} parent=0 // pred_check
    _
  $region3: #{_forward_impl.2} parent=0 // pred_check_branch
    %12 = sbr.rel (0) target = $region5
  $region4: #{_forward_impl.2} parent=0 // pred_region
    _
  $region5: #{_forward_impl.2} parent=0 // pred_fallthru
    _
  // Predicated region
  $region6: #{_forward_impl.2} parent=0 // pred_check
    _
  $region7: #{_forward_impl.2} parent=0 // pred_check_branch
    %14 = sbr.rel (0) target = $region9
  $region8: #{_forward_impl.2} parent=0 // pred_region
    _
  $region9: #{_forward_impl.2} parent=0 // pred_fallthru
    _
  // Predicated region
  $region10: #{_forward_impl.2} parent=0 // pred_check
    _
  $region11: #{_forward_impl.2} parent=0 // pred_check_branch
    %16 = sbr.rel (0) target = $region13
  $region12: #{_forward_impl.2} parent=0 // pred_region
    _
  $region13: #{_forward_impl.2} parent=0 // pred_fallthru
    _
  // Predicated region
  $region14: #{_forward_impl.2} parent=0 // pred_check
    _
  $region15: #{_forward_impl.2} parent=0 // pred_check_branch
    %18 = sbr.rel (0) target = $region17
  $region16: #{_forward_impl.2} parent=0 // pred_region
    _
  $region17: #{_forward_impl.2} parent=0 // pred_fallthru
    _
  // Predicated region
  $region18: #{_forward_impl.2} parent=0 // pred_check
    _
  $region19: #{_forward_impl.2} parent=0 // pred_check_branch
    %20 = sbr.rel (0) target = $region21
  $region20: #{_forward_impl.2} parent=0 // pred_region
    _
  $region21: #{_forward_impl.2} parent=0 // pred_fallthru
    _
  // Predicated region
  $region22: #{_forward_impl.2} parent=0 // pred_check
    _
  $region23: #{_forward_impl.2} parent=0 // pred_check_branch
    %22 = sbr.rel (0) target = $region25
  $region24: #{_forward_impl.2} parent=0 // pred_region
    _
  $region25: #{_forward_impl.2} parent=0 // pred_fallthru
    _
  %p23 = scmp.eq.s32.totalorder 0, 0
  // Predicated region
  $region26: #{_forward_impl.2} parent=0 // pred_check
    %p24 = pneg %p23
  $region27: #{_forward_impl.2} parent=0 // pred_check_branch
    %26 = sbr.rel (%p24) target = $region29
  $region28: #{_forward_impl.2} parent=0 // pred_region
    %27 = vst [vmem:[#allocation2] sm:$0xff] 0.0
    %28 = vst [vmem:[#allocation2 + $0x8] sm:$0xff] 0.0
    %29 = vst [vmem:[#allocation2 + $0x10] sm:$0xff] 0.0
    %30 = vst [vmem:[#allocation2 + $0x18] sm:$0xff] 0.0
    %31 = vst [vmem:[#allocation2 + $0x20] sm:$0xff] 0.0
    %32 = vst [vmem:[#allocation2 + $0x28] sm:$0xff] 0.0
    %33 = vst [vmem:[#allocation2 + $0x30] sm:$0xff] 0.0
    %34 = vst [vmem:[#allocation2 + $0x38] sm:$0xff] 0.0
    %35 = vst [vmem:[#allocation2 + $0x40] sm:$0xff] 0.0
    %36 = vst [vmem:[#allocation2 + $0x48] sm:$0xff] 0.0
    %37 = vst [vmem:[#allocation2 + $0x50] sm:$0xff] 0.0
    %38 = vst [vmem:[#allocation2 + $0x58] sm:$0xff] 0.0
    %39 = vst [vmem:[#allocation2 + $0x60] sm:$0xff] 0.0
    %40 = vst [vmem:[#allocation2 + $0x68] sm:$0xff] 0.0
    %41 = vst [vmem:[#allocation2 + $0x70] sm:$0xff] 0.0
    %42 = vst [vmem:[#allocation2 + $0x78] sm:$0xff] 0.0
  $region29: #{_forward_impl.2} parent=0 // pred_fallthru
    _
  %v43 = vld [vmem:[#allocation2] sm:$0xff]
  %v44 = vld [vmem:[#allocation2 + $0x8] sm:$0xff]
  %v45 = vld [vmem:[#allocation2 + $0x10] sm:$0xff]
  %v46 = vld [vmem:[#allocation2 + $0x18] sm:$0xff]
  %v47 = vld [vmem:[#allocation2 + $0x20] sm:$0xff]
  %v48 = vld [vmem:[#allocation2 + $0x28] sm:$0xff]
  %v49 = vld [vmem:[#allocation2 + $0x30] sm:$0xff]
  %v50 = vld [vmem:[#allocation2 + $0x38] sm:$0xff]
  %v51 = vld [vmem:[#allocation2 + $0x40] sm:$0xff]
  %v52 = vld [vmem:[#allocation2 + $0x48] sm:$0xff]
  %v53 = vld [vmem:[#allocation2 + $0x50] sm:$0xff]
  %v54 = vld [vmem:[#allocation2 + $0x58] sm:$0xff]
  %v55 = vld [vmem:[#allocation2 + $0x60] sm:$0xff]
  %v56 = vld [vmem:[#allocation2 + $0x68] sm:$0xff]
  %v57 = vld [vmem:[#allocation2 + $0x70] sm:$0xff]
  %v58 = vld [vmem:[#allocation2 + $0x78] sm:$0xff]
  %v59 = vld [vmem:[%s0] sm:$0xf]
  %v60 = vld [vmem:[%s0 + $0x4] sm:$0xf]
  %v61 = vld [vmem:[%s0 + $0x8] sm:$0xf]
  %v62 = vld [vmem:[%s0 + $0xc] sm:$0xf]
  %v63 = vld [vmem:[%s0 + $0x10] sm:$0xf]
  %v64 = vld [vmem:[%s0 + $0x14] sm:$0xf]
  %v65 = vld [vmem:[%s0 + $0x18] sm:$0xf]
  %v66 = vld [vmem:[%s0 + $0x1c] sm:$0xf]
  %v67 = vld [vmem:[%s0 + $0x20] sm:$0xf]
  %v68 = vld [vmem:[%s0 + $0x24] sm:$0xf]
  %v69 = vld [vmem:[%s0 + $0x28] sm:$0xf]
  %v70 = vld [vmem:[%s0 + $0x2c] sm:$0xf]
  %v71 = vld [vmem:[%s0 + $0x30] sm:$0xf]
  %v72 = vld [vmem:[%s0 + $0x34] sm:$0xf]
  %v73 = vld [vmem:[%s0 + $0x38] sm:$0xf]
  %v74 = vld [vmem:[%s0 + $0x3c] sm:$0xf]
  %v75 = vld [vmem:[%s1] sm:$0xf]
  %v76 = vld [vmem:[%s1 + $0x4] sm:$0xf]
  %v77 = vld [vmem:[%s1 + $0x8] sm:$0xf]
  %v78 = vld [vmem:[%s1 + $0xc] sm:$0xf]
  %v79 = vld [vmem:[%s1 + $0x10] sm:$0xf]
  %v80 = vld [vmem:[%s1 + $0x14] sm:$0xf]
  %v81 = vld [vmem:[%s1 + $0x18] sm:$0xf]
  %v82 = vld [vmem:[%s1 + $0x1c] sm:$0xf]
  %v83 = vld [vmem:[%s1 + $0x20] sm:$0xf]
  %v84 = vld [vmem:[%s1 + $0x24] sm:$0xf]
  %v85 = vld [vmem:[%s1 + $0x28] sm:$0xf]
  %v86 = vld [vmem:[%s1 + $0x2c] sm:$0xf]
  %v87 = vld [vmem:[%s1 + $0x30] sm:$0xf]
  %v88 = vld [vmem:[%s1 + $0x34] sm:$0xf]
  %v89 = vld [vmem:[%s1 + $0x38] sm:$0xf]
  %v90 = vld [vmem:[%s1 + $0x3c] sm:$0xf]
  %v107 = vunpack.c.l.b16 %v59
  %v108 = vunpack.c.l.b16 %v60
  %v109 = vunpack.c.l.b16 %v61
  %v110 = vunpack.c.l.b16 %v62
  %v111 = vunpack.c.l.b16 %v63
  %v112 = vunpack.c.l.b16 %v64
  %v113 = vunpack.c.l.b16 %v65
  %v114 = vunpack.c.l.b16 %v66
  %v115 = vunpack.c.l.b16 %v67
  %v116 = vunpack.c.l.b16 %v68
  %v117 = vunpack.c.l.b16 %v69
  %v118 = vunpack.c.l.b16 %v70
  %v119 = vunpack.c.l.b16 %v71
  %v120 = vunpack.c.l.b16 %v72
  %v121 = vunpack.c.l.b16 %v73
  %v122 = vunpack.c.l.b16 %v74
  %v123 = vpack.c.b16 %v108, %v107
  %v124 = vpack.c.b16 %v110, %v109
  %v125 = vpack.c.b16 %v112, %v111
  %v126 = vpack.c.b16 %v114, %v113
  %v127 = vpack.c.b16 %v116, %v115
  %v128 = vpack.c.b16 %v118, %v117
  %v129 = vpack.c.b16 %v120, %v119
  %v130 = vpack.c.b16 %v122, %v121
  %v155 = vunpack.c.l.b16 %v75
  %v156 = vunpack.c.l.b16 %v76
  %v157 = vunpack.c.l.b16 %v77
  %v158 = vunpack.c.l.b16 %v78
  %v159 = vunpack.c.l.b16 %v79
  %v160 = vunpack.c.l.b16 %v80
  %v161 = vunpack.c.l.b16 %v81
  %v162 = vunpack.c.l.b16 %v82
  %v163 = vunpack.c.l.b16 %v83
  %v164 = vunpack.c.l.b16 %v84
  %v165 = vunpack.c.l.b16 %v85
  %v166 = vunpack.c.l.b16 %v86
  %v167 = vunpack.c.l.b16 %v87
  %v168 = vunpack.c.l.b16 %v88
  %v169 = vunpack.c.l.b16 %v89
  %v170 = vunpack.c.l.b16 %v90
  %v171 = vpack.c.b16 %v156, %v155
  %v172 = vpack.c.b16 %v158, %v157
  %v173 = vpack.c.b16 %v160, %v159
  %v174 = vpack.c.b16 %v162, %v161
  %v175 = vpack.c.b16 %v164, %v163
  %v176 = vpack.c.b16 %v166, %v165
  %v177 = vpack.c.b16 %v168, %v167
  %v178 = vpack.c.b16 %v170, %v169
  %187 = vmatpush.bf16.msra.mxu0 %v178
  %188 = vmatpush.bf16.msra.mxu0 %v177
  %189 = vmatpush.bf16.msra.mxu0 %v176
  %190 = vmatpush.bf16.msra.mxu0 %v175
  %191 = vmatpush.bf16.msra.mxu0 %v174
  %192 = vmatpush.bf16.msra.mxu0 %v173
  %193 = vmatpush.bf16.msra.mxu0 %v172
  %194 = vmatpush.bf16.msra.mxu0 %v171
  %195 = vmatmul.bf16.gmra.mxu0 %v123
  %v196 = vpop.f32.mrf.mxu0
  %v197 = vadd.f32 0.0, %v196
  %v198 = vpop.f32.mrf.mxu0
  %v199 = vadd.f32 0.0, %v198
  %200 = vmatmul.bf16.gmra.mxu0 %v124
  %v201 = vpop.f32.mrf.mxu0
  %v202 = vadd.f32 0.0, %v201
  %v203 = vpop.f32.mrf.mxu0
  %v204 = vadd.f32 0.0, %v203
  %205 = vmatmul.bf16.gmra.mxu0 %v125
  %v206 = vpop.f32.mrf.mxu0
  %v207 = vadd.f32 0.0, %v206
  %v208 = vpop.f32.mrf.mxu0
  %v209 = vadd.f32 0.0, %v208
  %210 = vmatmul.bf16.gmra.mxu0 %v126
  %v211 = vpop.f32.mrf.mxu0
  %v212 = vadd.f32 0.0, %v211
  %v213 = vpop.f32.mrf.mxu0
  %v214 = vadd.f32 0.0, %v213
  %215 = vmatmul.bf16.gmra.mxu0 %v127
  %v216 = vpop.f32.mrf.mxu0
  %v217 = vadd.f32 0.0, %v216
  %v218 = vpop.f32.mrf.mxu0
  %v219 = vadd.f32 0.0, %v218
  %220 = vmatmul.bf16.gmra.mxu0 %v128
  %v221 = vpop.f32.mrf.mxu0
  %v222 = vadd.f32 0.0, %v221
  %v223 = vpop.f32.mrf.mxu0
  %v224 = vadd.f32 0.0, %v223
  %225 = vmatmul.bf16.gmra.mxu0 %v129
  %v226 = vpop.f32.mrf.mxu0
  %v227 = vadd.f32 0.0, %v226
  %v228 = vpop.f32.mrf.mxu0
  %v229 = vadd.f32 0.0, %v228
  %230 = vmatmul.bf16.gmra.mxu0 %v130
  %v231 = vpop.f32.mrf.mxu0
  %v232 = vadd.f32 0.0, %v231
  %v233 = vpop.f32.mrf.mxu0
  %v234 = vadd.f32 0.0, %v233
  %235 = vdwg.mxu0
  %v236 = vadd.f32 %v43, %v197
  %v237 = vadd.f32 %v44, %v199
  %v238 = vadd.f32 %v45, %v202
  %v239 = vadd.f32 %v46, %v204
  %v240 = vadd.f32 %v47, %v207
  %v241 = vadd.f32 %v48, %v209
  %v242 = vadd.f32 %v49, %v212
  %v243 = vadd.f32 %v50, %v214
  %v244 = vadd.f32 %v51, %v217
  %v245 = vadd.f32 %v52, %v219
  %v246 = vadd.f32 %v53, %v222
  %v247 = vadd.f32 %v54, %v224
  %v248 = vadd.f32 %v55, %v227
  %v249 = vadd.f32 %v56, %v229
  %v250 = vadd.f32 %v57, %v232
  %v251 = vadd.f32 %v58, %v234
  %252 = vst [vmem:[#allocation2] sm:$0xff] %v236
  %253 = vst [vmem:[#allocation2 + $0x8] sm:$0xff] %v237
  %254 = vst [vmem:[#allocation2 + $0x10] sm:$0xff] %v238
  %255 = vst [vmem:[#allocation2 + $0x18] sm:$0xff] %v239
  %256 = vst [vmem:[#allocation2 + $0x20] sm:$0xff] %v240
  %257 = vst [vmem:[#allocation2 + $0x28] sm:$0xff] %v241
  %258 = vst [vmem:[#allocation2 + $0x30] sm:$0xff] %v242
  %259 = vst [vmem:[#allocation2 + $0x38] sm:$0xff] %v243
  %260 = vst [vmem:[#allocation2 + $0x40] sm:$0xff] %v244
  %261 = vst [vmem:[#allocation2 + $0x48] sm:$0xff] %v245
  %262 = vst [vmem:[#allocation2 + $0x50] sm:$0xff] %v246
  %263 = vst [vmem:[#allocation2 + $0x58] sm:$0xff] %v247
  %264 = vst [vmem:[#allocation2 + $0x60] sm:$0xff] %v248
  %265 = vst [vmem:[#allocation2 + $0x68] sm:$0xff] %v249
  %266 = vst [vmem:[#allocation2 + $0x70] sm:$0xff] %v250
  %267 = vst [vmem:[#allocation2 + $0x78] sm:$0xff] %v251
  // Predicated region
  $region30: #{_forward_impl.2} parent=0 // pred_check
    %p268 = pneg %p23
  $region31: #{_forward_impl.2} parent=0 // pred_check_branch
    %270 = sbr.rel (%p268) target = $region33
  $region32: #{_forward_impl.2} parent=0 // pred_region
    %v271 = vld [vmem:[#allocation2] sm:$0xff]
    %v272 = vld [vmem:[#allocation2 + $0x8] sm:$0xff]
    %v273 = vld [vmem:[#allocation2 + $0x10] sm:$0xff]
    %v274 = vld [vmem:[#allocation2 + $0x18] sm:$0xff]
    %v275 = vld [vmem:[#allocation2 + $0x20] sm:$0xff]
    %v276 = vld [vmem:[#allocation2 + $0x28] sm:$0xff]
    %v277 = vld [vmem:[#allocation2 + $0x30] sm:$0xff]
    %v278 = vld [vmem:[#allocation2 + $0x38] sm:$0xff]
    %v279 = vld [vmem:[#allocation2 + $0x40] sm:$0xff]
    %v280 = vld [vmem:[#allocation2 + $0x48] sm:$0xff]
    %v281 = vld [vmem:[#allocation2 + $0x50] sm:$0xff]
    %v282 = vld [vmem:[#allocation2 + $0x58] sm:$0xff]
    %v283 = vld [vmem:[#allocation2 + $0x60] sm:$0xff]
    %v284 = vld [vmem:[#allocation2 + $0x68] sm:$0xff]
    %v285 = vld [vmem:[#allocation2 + $0x70] sm:$0xff]
    %v286 = vld [vmem:[#allocation2 + $0x78] sm:$0xff]
    %v287 = vld [vmem:[%s3] sm:$0xff]
    %v288 = vld [vmem:[%s3 + $0x8] sm:$0xff]
    %v289 = vld [vmem:[%s3 + $0x10] sm:$0xff]
    %v290 = vld [vmem:[%s3 + $0x18] sm:$0xff]
    %v291 = vld [vmem:[%s3 + $0x20] sm:$0xff]
    %v292 = vld [vmem:[%s3 + $0x28] sm:$0xff]
    %v293 = vld [vmem:[%s3 + $0x30] sm:$0xff]
    %v294 = vld [vmem:[%s3 + $0x38] sm:$0xff]
    %v295 = vld [vmem:[%s3 + $0x40] sm:$0xff]
    %v296 = vld [vmem:[%s3 + $0x48] sm:$0xff]
    %v297 = vld [vmem:[%s3 + $0x50] sm:$0xff]
    %v298 = vld [vmem:[%s3 + $0x58] sm:$0xff]
    %v299 = vld [vmem:[%s3 + $0x60] sm:$0xff]
    %v300 = vld [vmem:[%s3 + $0x68] sm:$0xff]
    %v301 = vld [vmem:[%s3 + $0x70] sm:$0xff]
    %v302 = vld [vmem:[%s3 + $0x78] sm:$0xff]
    %304 = vset.pattern.permute.xlu0 0
    %305 = vperm.xlu0 %304, %v287
    %v306 = vpop.permute.xlu0 %305
    %309 = vset.pattern.permute.xlu0 0
    %310 = vperm.xlu0 %309, %v288
    %v311 = vpop.permute.xlu0 %310
    %314 = vset.pattern.permute.xlu0 0
    %315 = vperm.xlu0 %314, %v289
    %v316 = vpop.permute.xlu0 %315
    %319 = vset.pattern.permute.xlu0 0
    %320 = vperm.xlu0 %319, %v290
    %v321 = vpop.permute.xlu0 %320
    %324 = vset.pattern.permute.xlu0 0
    %325 = vperm.xlu0 %324, %v291
    %v326 = vpop.permute.xlu0 %325
    %329 = vset.pattern.permute.xlu0 0
    %330 = vperm.xlu0 %329, %v292
    %v331 = vpop.permute.xlu0 %330
    %334 = vset.pattern.permute.xlu0 0
    %335 = vperm.xlu0 %334, %v293
    %v336 = vpop.permute.xlu0 %335
    %339 = vset.pattern.permute.xlu0 0
    %340 = vperm.xlu0 %339, %v294
    %v341 = vpop.permute.xlu0 %340
    %344 = vset.pattern.permute.xlu0 0
    %345 = vperm.xlu0 %344, %v295
    %v346 = vpop.permute.xlu0 %345
    %349 = vset.pattern.permute.xlu0 0
    %350 = vperm.xlu0 %349, %v296
    %v351 = vpop.permute.xlu0 %350
    %354 = vset.pattern.permute.xlu0 0
    %355 = vperm.xlu0 %354, %v297
    %v356 = vpop.permute.xlu0 %355
    %359 = vset.pattern.permute.xlu0 0
    %360 = vperm.xlu0 %359, %v298
    %v361 = vpop.permute.xlu0 %360
    %364 = vset.pattern.permute.xlu0 0
    %365 = vperm.xlu0 %364, %v299
    %v366 = vpop.permute.xlu0 %365
    %369 = vset.pattern.permute.xlu0 0
    %370 = vperm.xlu0 %369, %v300
    %v371 = vpop.permute.xlu0 %370
    %374 = vset.pattern.permute.xlu0 0
    %375 = vperm.xlu0 %374, %v301
    %v376 = vpop.permute.xlu0 %375
    %379 = vset.pattern.permute.xlu0 0
    %380 = vperm.xlu0 %379, %v302
    %v381 = vpop.permute.xlu0 %380
    %v383 = vmul.f32 %v271, %v306
    %v384 = vmul.f32 %v272, %v311
    %v385 = vmul.f32 %v273, %v316
    %v386 = vmul.f32 %v274, %v321
    %v387 = vmul.f32 %v275, %v326
    %v388 = vmul.f32 %v276, %v331
    %v389 = vmul.f32 %v277, %v336
    %v390 = vmul.f32 %v278, %v341
    %v391 = vmul.f32 %v279, %v346
    %v392 = vmul.f32 %v280, %v351
    %v393 = vmul.f32 %v281, %v356
    %v394 = vmul.f32 %v282, %v361
    %v395 = vmul.f32 %v283, %v366
    %v396 = vmul.f32 %v284, %v371
    %v397 = vmul.f32 %v285, %v376
    %v398 = vmul.f32 %v286, %v381
    %v399 = vld [vmem:[%s2] sm:$0xf]
    %v400 = vld [vmem:[%s2 + $0x4] sm:$0xf]
    %v401 = vld [vmem:[%s2 + $0x8] sm:$0xf]
    %v402 = vld [vmem:[%s2 + $0xc] sm:$0xf]
    %v403 = vld [vmem:[%s2 + $0x10] sm:$0xf]
    %v404 = vld [vmem:[%s2 + $0x14] sm:$0xf]
    %v405 = vld [vmem:[%s2 + $0x18] sm:$0xf]
    %v406 = vld [vmem:[%s2 + $0x1c] sm:$0xf]
    %v407 = vld [vmem:[%s2 + $0x20] sm:$0xf]
    %v408 = vld [vmem:[%s2 + $0x24] sm:$0xf]
    %v409 = vld [vmem:[%s2 + $0x28] sm:$0xf]
    %v410 = vld [vmem:[%s2 + $0x2c] sm:$0xf]
    %v411 = vld [vmem:[%s2 + $0x30] sm:$0xf]
    %v412 = vld [vmem:[%s2 + $0x34] sm:$0xf]
    %v413 = vld [vmem:[%s2 + $0x38] sm:$0xf]
    %v414 = vld [vmem:[%s2 + $0x3c] sm:$0xf]
    %v415 = vpack.c.bf16 %v383, %v383
    %v416 = vpack.c.bf16 %v384, %v384
    %v417 = vpack.c.bf16 %v385, %v385
    %v418 = vpack.c.bf16 %v386, %v386
    %v419 = vpack.c.bf16 %v387, %v387
    %v420 = vpack.c.bf16 %v388, %v388
    %v421 = vpack.c.bf16 %v389, %v389
    %v422 = vpack.c.bf16 %v390, %v390
    %v423 = vpack.c.bf16 %v391, %v391
    %v424 = vpack.c.bf16 %v392, %v392
    %v425 = vpack.c.bf16 %v393, %v393
    %v426 = vpack.c.bf16 %v394, %v394
    %v427 = vpack.c.bf16 %v395, %v395
    %v428 = vpack.c.bf16 %v396, %v396
    %v429 = vpack.c.bf16 %v397, %v397
    %v430 = vpack.c.bf16 %v398, %v398
    %v447 = vunpack.c.l.b16 %v399
    %v448 = vunpack.c.l.b16 %v400
    %v449 = vunpack.c.l.b16 %v401
    %v450 = vunpack.c.l.b16 %v402
    %v451 = vunpack.c.l.b16 %v403
    %v452 = vunpack.c.l.b16 %v404
    %v453 = vunpack.c.l.b16 %v405
    %v454 = vunpack.c.l.b16 %v406
    %v455 = vunpack.c.l.b16 %v407
    %v456 = vunpack.c.l.b16 %v408
    %v457 = vunpack.c.l.b16 %v409
    %v458 = vunpack.c.l.b16 %v410
    %v459 = vunpack.c.l.b16 %v411
    %v460 = vunpack.c.l.b16 %v412
    %v461 = vunpack.c.l.b16 %v413
    %v462 = vunpack.c.l.b16 %v414
    %v463 = vpack.c.b16 %v448, %v447
    %v464 = vpack.c.b16 %v450, %v449
    %v465 = vpack.c.b16 %v452, %v451
    %v466 = vpack.c.b16 %v454, %v453
    %v467 = vpack.c.b16 %v456, %v455
    %v468 = vpack.c.b16 %v458, %v457
    %v469 = vpack.c.b16 %v460, %v459
    %v470 = vpack.c.b16 %v462, %v461
    %v495 = vunpack.c.l.b16 %v415
    %v496 = vunpack.c.l.b16 %v416
    %v497 = vunpack.c.l.b16 %v417
    %v498 = vunpack.c.l.b16 %v418
    %v499 = vunpack.c.l.b16 %v419
    %v500 = vunpack.c.l.b16 %v420
    %v501 = vunpack.c.l.b16 %v421
    %v502 = vunpack.c.l.b16 %v422
    %v503 = vunpack.c.l.b16 %v423
    %v504 = vunpack.c.l.b16 %v424
    %v505 = vunpack.c.l.b16 %v425
    %v506 = vunpack.c.l.b16 %v426
    %v507 = vunpack.c.l.b16 %v427
    %v508 = vunpack.c.l.b16 %v428
    %v509 = vunpack.c.l.b16 %v429
    %v510 = vunpack.c.l.b16 %v430
    %v511 = vpack.c.b16 %v496, %v495
    %v512 = vpack.c.b16 %v498, %v497
    %v513 = vpack.c.b16 %v500, %v499
    %v514 = vpack.c.b16 %v502, %v501
    %v515 = vpack.c.b16 %v504, %v503
    %v516 = vpack.c.b16 %v506, %v505
    %v517 = vpack.c.b16 %v508, %v507
    %v518 = vpack.c.b16 %v510, %v509
    %v527 = vld [vmem:[%s4] sm:$0xf]
    %v528 = vld [vmem:[%s4 + $0x4] sm:$0xf]
    %v529 = vld [vmem:[%s4 + $0x8] sm:$0xf]
    %v530 = vld [vmem:[%s4 + $0xc] sm:$0xf]
    %v531 = vld [vmem:[%s4 + $0x10] sm:$0xf]
    %v532 = vld [vmem:[%s4 + $0x14] sm:$0xf]
    %v533 = vld [vmem:[%s4 + $0x18] sm:$0xf]
    %v534 = vld [vmem:[%s4 + $0x1c] sm:$0xf]
    %v535 = vld [vmem:[%s4 + $0x20] sm:$0xf]
    %v536 = vld [vmem:[%s4 + $0x24] sm:$0xf]
    %v537 = vld [vmem:[%s4 + $0x28] sm:$0xf]
    %v538 = vld [vmem:[%s4 + $0x2c] sm:$0xf]
    %v539 = vld [vmem:[%s4 + $0x30] sm:$0xf]
    %v540 = vld [vmem:[%s4 + $0x34] sm:$0xf]
    %v541 = vld [vmem:[%s4 + $0x38] sm:$0xf]
    %v542 = vld [vmem:[%s4 + $0x3c] sm:$0xf]
    %v543 = vld [vmem:[%s4 + $0x40] sm:$0xf]
    %v544 = vld [vmem:[%s4 + $0x44] sm:$0xf]
    %v545 = vld [vmem:[%s4 + $0x48] sm:$0xf]
    %v546 = vld [vmem:[%s4 + $0x4c] sm:$0xf]
    %v547 = vld [vmem:[%s4 + $0x50] sm:$0xf]
    %v548 = vld [vmem:[%s4 + $0x54] sm:$0xf]
    %v549 = vld [vmem:[%s4 + $0x58] sm:$0xf]
    %v550 = vld [vmem:[%s4 + $0x5c] sm:$0xf]
    %v551 = vld [vmem:[%s4 + $0x60] sm:$0xf]
    %v552 = vld [vmem:[%s4 + $0x64] sm:$0xf]
    %v553 = vld [vmem:[%s4 + $0x68] sm:$0xf]
    %v554 = vld [vmem:[%s4 + $0x6c] sm:$0xf]
    %v555 = vld [vmem:[%s4 + $0x70] sm:$0xf]
    %v556 = vld [vmem:[%s4 + $0x74] sm:$0xf]
    %v557 = vld [vmem:[%s4 + $0x78] sm:$0xf]
    %v558 = vld [vmem:[%s4 + $0x7c] sm:$0xf]
    %v559 = vld [vmem:[%s5] sm:$0x1]
    %v561 = vperm.slane %v559, 0
    %v595 = vunpack.c.l.b16 %v527
    %v596 = vunpack.c.l.b16 %v528
    %v597 = vunpack.c.l.b16 %v529
    %v598 = vunpack.c.l.b16 %v530
    %v599 = vunpack.c.l.b16 %v531
    %v600 = vunpack.c.l.b16 %v532
    %v601 = vunpack.c.l.b16 %v533
    %v602 = vunpack.c.l.b16 %v534
    %v603 = vunpack.c.l.b16 %v535
    %v604 = vunpack.c.l.b16 %v536
    %v605 = vunpack.c.l.b16 %v537
    %v606 = vunpack.c.l.b16 %v538
    %v607 = vunpack.c.l.b16 %v539
    %v608 = vunpack.c.l.b16 %v540
    %v609 = vunpack.c.l.b16 %v541
    %v610 = vunpack.c.l.b16 %v542
    %v611 = vunpack.c.l.b16 %v543
    %v612 = vunpack.c.l.b16 %v544
    %v613 = vunpack.c.l.b16 %v545
    %v614 = vunpack.c.l.b16 %v546
    %v615 = vunpack.c.l.b16 %v547
    %v616 = vunpack.c.l.b16 %v548
    %v617 = vunpack.c.l.b16 %v549
    %v618 = vunpack.c.l.b16 %v550
    %v619 = vunpack.c.l.b16 %v551
    %v620 = vunpack.c.l.b16 %v552
    %v621 = vunpack.c.l.b16 %v553
    %v622 = vunpack.c.l.b16 %v554
    %v623 = vunpack.c.l.b16 %v555
    %v624 = vunpack.c.l.b16 %v556
    %v625 = vunpack.c.l.b16 %v557
    %v626 = vunpack.c.l.b16 %v558
    %v627 = vpack.c.b16 %v596, %v595
    %v628 = vpack.c.b16 %v598, %v597
    %v629 = vpack.c.b16 %v600, %v599
    %v630 = vpack.c.b16 %v602, %v601
    %v631 = vpack.c.b16 %v604, %v603
    %v632 = vpack.c.b16 %v606, %v605
    %v633 = vpack.c.b16 %v608, %v607
    %v634 = vpack.c.b16 %v610, %v609
    %v635 = vpack.c.b16 %v612, %v611
    %v636 = vpack.c.b16 %v614, %v613
    %v637 = vpack.c.b16 %v616, %v615
    %v638 = vpack.c.b16 %v618, %v617
    %v639 = vpack.c.b16 %v620, %v619
    %v640 = vpack.c.b16 %v622, %v621
    %v641 = vpack.c.b16 %v624, %v623
    %v642 = vpack.c.b16 %v626, %v625
    %659 = vmatpush.bf16.msra.mxu0 %v634
    %660 = vmatpush.bf16.msra.mxu0 %v633
    %661 = vmatpush.bf16.msra.mxu0 %v632
    %662 = vmatpush.bf16.msra.mxu0 %v631
    %663 = vmatpush.bf16.msra.mxu0 %v630
    %664 = vmatpush.bf16.msra.mxu0 %v629
    %665 = vmatpush.bf16.msra.mxu0 %v628
    %666 = vmatpush.bf16.msra.mxu0 %v627
    %667 = vmatmul.bf16.gmra.mxu0 %v463
    %v668 = vpop.f32.mrf.mxu0
    %v669 = vadd.f32 %v561, %v668
    %v670 = vpop.f32.mrf.mxu0
    %v671 = vadd.f32 %v561, %v670
    %672 = vmatmul.bf16.gmra.mxu0 %v464
    %v673 = vpop.f32.mrf.mxu0
    %v674 = vadd.f32 %v561, %v673
    %v675 = vpop.f32.mrf.mxu0
    %v676 = vadd.f32 %v561, %v675
    %677 = vmatmul.bf16.gmra.mxu0 %v465
    %v678 = vpop.f32.mrf.mxu0
    %v679 = vadd.f32 %v561, %v678
    %v680 = vpop.f32.mrf.mxu0
    %v681 = vadd.f32 %v561, %v680
    %682 = vmatmul.bf16.gmra.mxu0 %v466
    %v683 = vpop.f32.mrf.mxu0
    %v684 = vadd.f32 %v561, %v683
    %v685 = vpop.f32.mrf.mxu0
    %v686 = vadd.f32 %v561, %v685
    %687 = vmatmul.bf16.gmra.mxu0 %v467
    %v688 = vpop.f32.mrf.mxu0
    %v689 = vadd.f32 %v561, %v688
    %v690 = vpop.f32.mrf.mxu0
    %v691 = vadd.f32 %v561, %v690
    %692 = vmatmul.bf16.gmra.mxu0 %v468
    %v693 = vpop.f32.mrf.mxu0
    %v694 = vadd.f32 %v561, %v693
    %v695 = vpop.f32.mrf.mxu0
    %v696 = vadd.f32 %v561, %v695
    %697 = vmatmul.bf16.gmra.mxu0 %v469
    %v698 = vpop.f32.mrf.mxu0
    %v699 = vadd.f32 %v561, %v698
    %v700 = vpop.f32.mrf.mxu0
    %v701 = vadd.f32 %v561, %v700
    %702 = vmatmul.bf16.gmra.mxu0 %v470
    %v703 = vpop.f32.mrf.mxu0
    %v704 = vadd.f32 %v561, %v703
    %v705 = vpop.f32.mrf.mxu0
    %v706 = vadd.f32 %v561, %v705
    %707 = vdwg.mxu0
    %708 = vmatpush.bf16.msra.mxu0 %v642
    %709 = vmatpush.bf16.msra.mxu0 %v641
    %710 = vmatpush.bf16.msra.mxu0 %v640
    %711 = vmatpush.bf16.msra.mxu0 %v639
    %712 = vmatpush.bf16.msra.mxu0 %v638
    %713 = vmatpush.bf16.msra.mxu0 %v637
    %714 = vmatpush.bf16.msra.mxu0 %v636
    %715 = vmatpush.bf16.msra.mxu0 %v635
    %716 = vmatmul.bf16.gmra.mxu0 %v511
    %v717 = vpop.f32.mrf.mxu0
    %v718 = vadd.f32 %v669, %v717
    %v719 = vpop.f32.mrf.mxu0
    %v720 = vadd.f32 %v671, %v719
    %721 = vmatmul.bf16.gmra.mxu0 %v512
    %v722 = vpop.f32.mrf.mxu0
    %v723 = vadd.f32 %v674, %v722
    %v724 = vpop.f32.mrf.mxu0
    %v725 = vadd.f32 %v676, %v724
    %726 = vmatmul.bf16.gmra.mxu0 %v513
    %v727 = vpop.f32.mrf.mxu0
    %v728 = vadd.f32 %v679, %v727
    %v729 = vpop.f32.mrf.mxu0
    %v730 = vadd.f32 %v681, %v729
    %731 = vmatmul.bf16.gmra.mxu0 %v514
    %v732 = vpop.f32.mrf.mxu0
    %v733 = vadd.f32 %v684, %v732
    %v734 = vpop.f32.mrf.mxu0
    %v735 = vadd.f32 %v686, %v734
    %736 = vmatmul.bf16.gmra.mxu0 %v515
    %v737 = vpop.f32.mrf.mxu0
    %v738 = vadd.f32 %v689, %v737
    %v739 = vpop.f32.mrf.mxu0
    %v740 = vadd.f32 %v691, %v739
    %741 = vmatmul.bf16.gmra.mxu0 %v516
    %v742 = vpop.f32.mrf.mxu0
    %v743 = vadd.f32 %v694, %v742
    %v744 = vpop.f32.mrf.mxu0
    %v745 = vadd.f32 %v696, %v744
    %746 = vmatmul.bf16.gmra.mxu0 %v517
    %v747 = vpop.f32.mrf.mxu0
    %v748 = vadd.f32 %v699, %v747
    %v749 = vpop.f32.mrf.mxu0
    %v750 = vadd.f32 %v701, %v749
    %751 = vmatmul.bf16.gmra.mxu0 %v518
    %v752 = vpop.f32.mrf.mxu0
    %v753 = vadd.f32 %v704, %v752
    %v754 = vpop.f32.mrf.mxu0
    %v755 = vadd.f32 %v706, %v754
    %756 = vdwg.mxu0
    %v757 = vmax.f32 %v718, 0.0
    %v758 = vmax.f32 %v720, 0.0
    %v759 = vmax.f32 %v723, 0.0
    %v760 = vmax.f32 %v725, 0.0
    %v761 = vmax.f32 %v728, 0.0
    %v762 = vmax.f32 %v730, 0.0
    %v763 = vmax.f32 %v733, 0.0
    %v764 = vmax.f32 %v735, 0.0
    %v765 = vmax.f32 %v738, 0.0
    %v766 = vmax.f32 %v740, 0.0
    %v767 = vmax.f32 %v743, 0.0
    %v768 = vmax.f32 %v745, 0.0
    %v769 = vmax.f32 %v748, 0.0
    %v770 = vmax.f32 %v750, 0.0
    %v771 = vmax.f32 %v753, 0.0
    %v772 = vmax.f32 %v755, 0.0
    %v773 = vmul.f32 %v757, %v757
    %v774 = vmul.f32 %v758, %v758
    %v775 = vmul.f32 %v759, %v759
    %v776 = vmul.f32 %v760, %v760
    %v777 = vmul.f32 %v761, %v761
    %v778 = vmul.f32 %v762, %v762
    %v779 = vmul.f32 %v763, %v763
    %v780 = vmul.f32 %v764, %v764
    %v781 = vmul.f32 %v765, %v765
    %v782 = vmul.f32 %v766, %v766
    %v783 = vmul.f32 %v767, %v767
    %v784 = vmul.f32 %v768, %v768
    %v785 = vmul.f32 %v769, %v769
    %v786 = vmul.f32 %v770, %v770
    %v787 = vmul.f32 %v771, %v771
    %v788 = vmul.f32 %v772, %v772
    %789 = vadd.xlane.f32.xlu0 %v773
    %v790 = vpop.xlane.xlu0 %789
    %791 = vadd.xlane.f32.xlu0 %v774
    %v792 = vpop.xlane.xlu0 %791
    %793 = vadd.xlane.f32.xlu0 %v775
    %v794 = vpop.xlane.xlu0 %793
    %795 = vadd.xlane.f32.xlu0 %v776
    %v796 = vpop.xlane.xlu0 %795
    %797 = vadd.xlane.f32.xlu0 %v777
    %v798 = vpop.xlane.xlu0 %797
    %799 = vadd.xlane.f32.xlu0 %v778
    %v800 = vpop.xlane.xlu0 %799
    %801 = vadd.xlane.f32.xlu0 %v779
    %v802 = vpop.xlane.xlu0 %801
    %803 = vadd.xlane.f32.xlu0 %v780
    %v804 = vpop.xlane.xlu0 %803
    %805 = vadd.xlane.f32.xlu0 %v781
    %v806 = vpop.xlane.xlu0 %805
    %807 = vadd.xlane.f32.xlu0 %v782
    %v808 = vpop.xlane.xlu0 %807
    %809 = vadd.xlane.f32.xlu0 %v783
    %v810 = vpop.xlane.xlu0 %809
    %811 = vadd.xlane.f32.xlu0 %v784
    %v812 = vpop.xlane.xlu0 %811
    %813 = vadd.xlane.f32.xlu0 %v785
    %v814 = vpop.xlane.xlu0 %813
    %815 = vadd.xlane.f32.xlu0 %v786
    %v816 = vpop.xlane.xlu0 %815
    %817 = vadd.xlane.f32.xlu0 %v787
    %v818 = vpop.xlane.xlu0 %817
    %819 = vadd.xlane.f32.xlu0 %v788
    %v820 = vpop.xlane.xlu0 %819
    %v821 = vmax.f32 %v790, 1e-12
    %v822 = vmax.f32 %v792, 1e-12
    %v823 = vmax.f32 %v794, 1e-12
    %v824 = vmax.f32 %v796, 1e-12
    %v825 = vmax.f32 %v798, 1e-12
    %v826 = vmax.f32 %v800, 1e-12
    %v827 = vmax.f32 %v802, 1e-12
    %v828 = vmax.f32 %v804, 1e-12
    %v829 = vmax.f32 %v806, 1e-12
    %v830 = vmax.f32 %v808, 1e-12
    %v831 = vmax.f32 %v810, 1e-12
    %v832 = vmax.f32 %v812, 1e-12
    %v833 = vmax.f32 %v814, 1e-12
    %v834 = vmax.f32 %v816, 1e-12
    %v835 = vmax.f32 %v818, 1e-12
    %v836 = vmax.f32 %v820, 1e-12
    %v837 = vrsqrt.pop %v821
    %v838 = vmul.f32 %v837, %v821
    %v839 = vmul.f32 %v838, %v837
    %v840 = vmul.f32 0.5, %v839
    %v841 = vsub.f32 1.5, %v840
    %v842 = vmul.f32 %v837, %v841
    %vm843 = vweird.f32 %v821
    %vm844 = vweird.f32 %v837
    %vm845 = vmor %vm843, %vm844
    %v846 = vsel %vm845, %v837, %v842
    %v847 = vrsqrt.pop %v822
    %v848 = vmul.f32 %v847, %v822
    %v849 = vmul.f32 %v848, %v847
    %v850 = vmul.f32 0.5, %v849
    %v851 = vsub.f32 1.5, %v850
    %v852 = vmul.f32 %v847, %v851
    %vm853 = vweird.f32 %v822
    %vm854 = vweird.f32 %v847
    %vm855 = vmor %vm853, %vm854
    %v856 = vsel %vm855, %v847, %v852
    %v857 = vrsqrt.pop %v823
    %v858 = vmul.f32 %v857, %v823
    %v859 = vmul.f32 %v858, %v857
    %v860 = vmul.f32 0.5, %v859
    %v861 = vsub.f32 1.5, %v860
    %v862 = vmul.f32 %v857, %v861
    %vm863 = vweird.f32 %v823
    %vm864 = vweird.f32 %v857
    %vm865 = vmor %vm863, %vm864
    %v866 = vsel %vm865, %v857, %v862
    %v867 = vrsqrt.pop %v824
    %v868 = vmul.f32 %v867, %v824
    %v869 = vmul.f32 %v868, %v867
    %v870 = vmul.f32 0.5, %v869
    %v871 = vsub.f32 1.5, %v870
    %v872 = vmul.f32 %v867, %v871
    %vm873 = vweird.f32 %v824
    %vm874 = vweird.f32 %v867
    %vm875 = vmor %vm873, %vm874
    %v876 = vsel %vm875, %v867, %v872
    %v877 = vrsqrt.pop %v825
    %v878 = vmul.f32 %v877, %v825
    %v879 = vmul.f32 %v878, %v877
    %v880 = vmul.f32 0.5, %v879
    %v881 = vsub.f32 1.5, %v880
    %v882 = vmul.f32 %v877, %v881
    %vm883 = vweird.f32 %v825
    %vm884 = vweird.f32 %v877
    %vm885 = vmor %vm883, %vm884
    %v886 = vsel %vm885, %v877, %v882
    %v887 = vrsqrt.pop %v826
    %v888 = vmul.f32 %v887, %v826
    %v889 = vmul.f32 %v888, %v887
    %v890 = vmul.f32 0.5, %v889
    %v891 = vsub.f32 1.5, %v890
    %v892 = vmul.f32 %v887, %v891
    %vm893 = vweird.f32 %v826
    %vm894 = vweird.f32 %v887
    %vm895 = vmor %vm893, %vm894
    %v896 = vsel %vm895, %v887, %v892
    %v897 = vrsqrt.pop %v827
    %v898 = vmul.f32 %v897, %v827
    %v899 = vmul.f32 %v898, %v897
    %v900 = vmul.f32 0.5, %v899
    %v901 = vsub.f32 1.5, %v900
    %v902 = vmul.f32 %v897, %v901
    %vm903 = vweird.f32 %v827
    %vm904 = vweird.f32 %v897
    %vm905 = vmor %vm903, %vm904
    %v906 = vsel %vm905, %v897, %v902
    %v907 = vrsqrt.pop %v828
    %v908 = vmul.f32 %v907, %v828
    %v909 = vmul.f32 %v908, %v907
    %v910 = vmul.f32 0.5, %v909
    %v911 = vsub.f32 1.5, %v910
    %v912 = vmul.f32 %v907, %v911
    %vm913 = vweird.f32 %v828
    %vm914 = vweird.f32 %v907
    %vm915 = vmor %vm913, %vm914
    %v916 = vsel %vm915, %v907, %v912
    %v917 = vrsqrt.pop %v829
    %v918 = vmul.f32 %v917, %v829
    %v919 = vmul.f32 %v918, %v917
    %v920 = vmul.f32 0.5, %v919
    %v921 = vsub.f32 1.5, %v920
    %v922 = vmul.f32 %v917, %v921
    %vm923 = vweird.f32 %v829
    %vm924 = vweird.f32 %v917
    %vm925 = vmor %vm923, %vm924
    %v926 = vsel %vm925, %v917, %v922
    %v927 = vrsqrt.pop %v830
    %v928 = vmul.f32 %v927, %v830
    %v929 = vmul.f32 %v928, %v927
    %v930 = vmul.f32 0.5, %v929
    %v931 = vsub.f32 1.5, %v930
    %v932 = vmul.f32 %v927, %v931
    %vm933 = vweird.f32 %v830
    %vm934 = vweird.f32 %v927
    %vm935 = vmor %vm933, %vm934
    %v936 = vsel %vm935, %v927, %v932
    %v937 = vrsqrt.pop %v831
    %v938 = vmul.f32 %v937, %v831
    %v939 = vmul.f32 %v938, %v937
    %v940 = vmul.f32 0.5, %v939
    %v941 = vsub.f32 1.5, %v940
    %v942 = vmul.f32 %v937, %v941
    %vm943 = vweird.f32 %v831
    %vm944 = vweird.f32 %v937
    %vm945 = vmor %vm943, %vm944
    %v946 = vsel %vm945, %v937, %v942
    %v947 = vrsqrt.pop %v832
    %v948 = vmul.f32 %v947, %v832
    %v949 = vmul.f32 %v948, %v947
    %v950 = vmul.f32 0.5, %v949
    %v951 = vsub.f32 1.5, %v950
    %v952 = vmul.f32 %v947, %v951
    %vm953 = vweird.f32 %v832
    %vm954 = vweird.f32 %v947
    %vm955 = vmor %vm953, %vm954
    %v956 = vsel %vm955, %v947, %v952
    %v957 = vrsqrt.pop %v833
    %v958 = vmul.f32 %v957, %v833
    %v959 = vmul.f32 %v958, %v957
    %v960 = vmul.f32 0.5, %v959
    %v961 = vsub.f32 1.5, %v960
    %v962 = vmul.f32 %v957, %v961
    %vm963 = vweird.f32 %v833
    %vm964 = vweird.f32 %v957
    %vm965 = vmor %vm963, %vm964
    %v966 = vsel %vm965, %v957, %v962
    %v967 = vrsqrt.pop %v834
    %v968 = vmul.f32 %v967, %v834
    %v969 = vmul.f32 %v968, %v967
    %v970 = vmul.f32 0.5, %v969
    %v971 = vsub.f32 1.5, %v970
    %v972 = vmul.f32 %v967, %v971
    %vm973 = vweird.f32 %v834
    %vm974 = vweird.f32 %v967
    %vm975 = vmor %vm973, %vm974
    %v976 = vsel %vm975, %v967, %v972
    %v977 = vrsqrt.pop %v835
    %v978 = vmul.f32 %v977, %v835
    %v979 = vmul.f32 %v978, %v977
    %v980 = vmul.f32 0.5, %v979
    %v981 = vsub.f32 1.5, %v980
    %v982 = vmul.f32 %v977, %v981
    %vm983 = vweird.f32 %v835
    %vm984 = vweird.f32 %v977
    %vm985 = vmor %vm983, %vm984
    %v986 = vsel %vm985, %v977, %v982
    %v987 = vrsqrt.pop %v836
    %v988 = vmul.f32 %v987, %v836
    %v989 = vmul.f32 %v988, %v987
    %v990 = vmul.f32 0.5, %v989
    %v991 = vsub.f32 1.5, %v990
    %v992 = vmul.f32 %v987, %v991
    %vm993 = vweird.f32 %v836
    %vm994 = vweird.f32 %v987
    %vm995 = vmor %vm993, %vm994
    %v996 = vsel %vm995, %v987, %v992
    %v997 = vmul.f32 %v757, %v846
    %v998 = vmul.f32 %v758, %v856
    %v999 = vmul.f32 %v759, %v866
    %v1000 = vmul.f32 %v760, %v876
    %v1001 = vmul.f32 %v761, %v886
    %v1002 = vmul.f32 %v762, %v896
    %v1003 = vmul.f32 %v763, %v906
    %v1004 = vmul.f32 %v764, %v916
    %v1005 = vmul.f32 %v765, %v926
    %v1006 = vmul.f32 %v766, %v936
    %v1007 = vmul.f32 %v767, %v946
    %v1008 = vmul.f32 %v768, %v956
    %v1009 = vmul.f32 %v769, %v966
    %v1010 = vmul.f32 %v770, %v976
    %v1011 = vmul.f32 %v771, %v986
    %v1012 = vmul.f32 %v772, %v996
    %1013 = vst [vmem:[%s6] sm:$0xff] %v997
    %1014 = vst [vmem:[%s6 + $0x8] sm:$0xff] %v998
    %1015 = vst [vmem:[%s6 + $0x10] sm:$0xff] %v999
    %1016 = vst [vmem:[%s6 + $0x18] sm:$0xff] %v1000
    %1017 = vst [vmem:[%s6 + $0x20] sm:$0xff] %v1001
    %1018 = vst [vmem:[%s6 + $0x28] sm:$0xff] %v1002
    %1019 = vst [vmem:[%s6 + $0x30] sm:$0xff] %v1003
    %1020 = vst [vmem:[%s6 + $0x38] sm:$0xff] %v1004
    %1021 = vst [vmem:[%s6 + $0x40] sm:$0xff] %v1005
    %1022 = vst [vmem:[%s6 + $0x48] sm:$0xff] %v1006
    %1023 = vst [vmem:[%s6 + $0x50] sm:$0xff] %v1007
    %1024 = vst [vmem:[%s6 + $0x58] sm:$0xff] %v1008
    %1025 = vst [vmem:[%s6 + $0x60] sm:$0xff] %v1009
    %1026 = vst [vmem:[%s6 + $0x68] sm:$0xff] %v1010
    %1027 = vst [vmem:[%s6 + $0x70] sm:$0xff] %v1011
    %1028 = vst [vmem:[%s6 + $0x78] sm:$0xff] %v1012
  $region33: #{_forward_impl.2} parent=0 // pred_fallthru
    _
  // Predicated region
  $region34: #{_forward_impl.2} parent=0 // pred_check
    _
  $region35: #{_forward_impl.2} parent=0 // pred_check_branch
    %1030 = sbr.rel (0) target = $region37
  $region36: #{_forward_impl.2} parent=0 // pred_region
    _
  $region37: #{_forward_impl.2} parent=0 // pred_fallthru
    _
  // Predicated region
  $region38: #{_forward_impl.2} parent=0 // pred_check
    _
  $region39: #{_forward_impl.2} parent=0 // pred_check_branch
    %1032 = sbr.rel (0) target = $region41
  $region40: #{_forward_impl.2} parent=0 // pred_region
    _
  $region41: #{_forward_impl.2} parent=0 // pred_fallthru
    _

// kernel: _forward_impl.3
$region0: #{_forward_impl.3}
  #allocation0 [shape = 'u32[]', space=smem, size = 0x4, offset = 0x4, fixed_abs, tag = 'smem constant byte address 0x4 - core index']
  #allocation1 [shape = 'u32[72,128]{1,0:T(1,128)}', space=vmem, size = 0x9000, scoped, tag = 'internal scratch']
  #allocation2 [shape = 'f32[128,128]{1,0:T(8,128)}', space=vmem, size = 0x10000, scoped, tag = 'scratch operand']
  %s0 = inlined_call_operand.vmem [shape: bf16[128,128], index: 0, kind: input, shape index: {}]
  %s1 = inlined_call_operand.vmem [shape: bf16[128,128], index: 1, kind: input, shape index: {}, may-alias: {1,2}]
  %s2 = inlined_call_operand.vmem [shape: bf16[128,128], index: 2, kind: input, shape index: {}, may-alias: {1,2}]
  %s3 = inlined_call_operand.vmem [shape: f32[128,1], index: 3, kind: input, shape index: {}]
  %s4 = inlined_call_operand.vmem [shape: bf16[256,128], index: 4, kind: input, shape index: {}]
  %s5 = inlined_call_operand.vmem [shape: f32[1,128], index: 5, kind: input, shape index: {}]
  %s6 = inlined_call_operand.hbm [shape: f32[128,128], index: 6, kind: output, shape index: {}]
  %s7 = sld [smem:[#allocation0]]
  $region42: #{_forward_impl.3} parent=0
    _
  %s9 = ssub.s32 1, %s7
  %s10 = scalar_select 0, %s9, %s7
  $region1: #{_forward_impl.3} parent=0
    #allocation3 [shape = 'u8[65536]{0}', space=vmem, size = 0x10000, scoped, tag = 'output window, operand 0, single buffered']
    #allocation4 [shape = 's32[1]{0}', space=sflag, size = 0x4, scoped, tag = 'scoped memory for _forward_impl.3']
    %11 = vsyncpa [#allocation4], 0
    // Predicated region
    $region2: #{_forward_impl.3} parent=1 // pred_check
      _
    $region3: #{_forward_impl.3} parent=1 // pred_check_branch
      %13 = sbr.rel (0) target = $region5
    $region4: #{_forward_impl.3} parent=1 // pred_region
      _
    $region5: #{_forward_impl.3} parent=1 // pred_fallthru
      _
    // Predicated region
    $region6: #{_forward_impl.3} parent=1 // pred_check
      _
    $region7: #{_forward_impl.3} parent=1 // pred_check_branch
      %15 = sbr.rel (0) target = $region9
    $region8: #{_forward_impl.3} parent=1 // pred_region
      _
    $region9: #{_forward_impl.3} parent=1 // pred_fallthru
      _
    // Predicated region
    $region10: #{_forward_impl.3} parent=1 // pred_check
      _
    $region11: #{_forward_impl.3} parent=1 // pred_check_branch
      %17 = sbr.rel (0) target = $region13
    $region12: #{_forward_impl.3} parent=1 // pred_region
      _
    $region13: #{_forward_impl.3} parent=1 // pred_fallthru
      _
    // Predicated region
    $region14: #{_forward_impl.3} parent=1 // pred_check
      _
    $region15: #{_forward_impl.3} parent=1 // pred_check_branch
      %19 = sbr.rel (0) target = $region17
    $region16: #{_forward_impl.3} parent=1 // pred_region
      _
    $region17: #{_forward_impl.3} parent=1 // pred_fallthru
      _
    // Predicated region
    $region18: #{_forward_impl.3} parent=1 // pred_check
      _
    $region19: #{_forward_impl.3} parent=1 // pred_check_branch
      %21 = sbr.rel (0) target = $region21
    $region20: #{_forward_impl.3} parent=1 // pred_region
      _
    $region21: #{_forward_impl.3} parent=1 // pred_fallthru
      _
    // Predicated region
    $region22: #{_forward_impl.3} parent=1 // pred_check
      _
    $region23: #{_forward_impl.3} parent=1 // pred_check_branch
      %23 = sbr.rel (0) target = $region25
    $region24: #{_forward_impl.3} parent=1 // pred_region
      _
    $region25: #{_forward_impl.3} parent=1 // pred_fallthru
      _
    %p24 = scmp.eq.s32.totalorder 0, 0
    // Predicated region
    $region26: #{_forward_impl.3} parent=1 // pred_check
      %p25 = pneg %p24
    $region27: #{_forward_impl.3} parent=1 // pred_check_branch
      %27 = sbr.rel (%p25) target = $region29
    $region28: #{_forward_impl.3} parent=1 // pred_region
      %28 = vst [vmem:[#allocation2] sm:$0xff] 0.0
      %29 = vst [vmem:[#allocation2 + $0x8] sm:$0xff] 0.0
      %30 = vst [vmem:[#allocation2 + $0x10] sm:$0xff] 0.0
      %31 = vst [vmem:[#allocation2 + $0x18] sm:$0xff] 0.0
      %32 = vst [vmem:[#allocation2 + $0x20] sm:$0xff] 0.0
      %33 = vst [vmem:[#allocation2 + $0x28] sm:$0xff] 0.0
      %34 = vst [vmem:[#allocation2 + $0x30] sm:$0xff] 0.0
      %35 = vst [vmem:[#allocation2 + $0x38] sm:$0xff] 0.0
      %36 = vst [vmem:[#allocation2 + $0x40] sm:$0xff] 0.0
      %37 = vst [vmem:[#allocation2 + $0x48] sm:$0xff] 0.0
      %38 = vst [vmem:[#allocation2 + $0x50] sm:$0xff] 0.0
      %39 = vst [vmem:[#allocation2 + $0x58] sm:$0xff] 0.0
      %40 = vst [vmem:[#allocation2 + $0x60] sm:$0xff] 0.0
      %41 = vst [vmem:[#allocation2 + $0x68] sm:$0xff] 0.0
      %42 = vst [vmem:[#allocation2 + $0x70] sm:$0xff] 0.0
      %43 = vst [vmem:[#allocation2 + $0x78] sm:$0xff] 0.0
    $region29: #{_forward_impl.3} parent=1 // pred_fallthru
      _
    %v44 = vld [vmem:[#allocation2] sm:$0xff]
    %v45 = vld [vmem:[#allocation2 + $0x8] sm:$0xff]
    %v46 = vld [vmem:[#allocation2 + $0x10] sm:$0xff]
    %v47 = vld [vmem:[#allocation2 + $0x18] sm:$0xff]
    %v48 = vld [vmem:[#allocation2 + $0x20] sm:$0xff]
    %v49 = vld [vmem:[#allocation2 + $0x28] sm:$0xff]
    %v50 = vld [vmem:[#allocation2 + $0x30] sm:$0xff]
    %v51 = vld [vmem:[#allocation2 + $0x38] sm:$0xff]
    %v52 = vld [vmem:[#allocation2 + $0x40] sm:$0xff]
    %v53 = vld [vmem:[#allocation2 + $0x48] sm:$0xff]
    %v54 = vld [vmem:[#allocation2 + $0x50] sm:$0xff]
    %v55 = vld [vmem:[#allocation2 + $0x58] sm:$0xff]
    %v56 = vld [vmem:[#allocation2 + $0x60] sm:$0xff]
    %v57 = vld [vmem:[#allocation2 + $0x68] sm:$0xff]
    %v58 = vld [vmem:[#allocation2 + $0x70] sm:$0xff]
    %v59 = vld [vmem:[#allocation2 + $0x78] sm:$0xff]
    %v60 = vld [vmem:[%s0] sm:$0xf]
    %v61 = vld [vmem:[%s0 + $0x4] sm:$0xf]
    %v62 = vld [vmem:[%s0 + $0x8] sm:$0xf]
    %v63 = vld [vmem:[%s0 + $0xc] sm:$0xf]
    %v64 = vld [vmem:[%s0 + $0x10] sm:$0xf]
    %v65 = vld [vmem:[%s0 + $0x14] sm:$0xf]
    %v66 = vld [vmem:[%s0 + $0x18] sm:$0xf]
    %v67 = vld [vmem:[%s0 + $0x1c] sm:$0xf]
    %v68 = vld [vmem:[%s0 + $0x20] sm:$0xf]
    %v69 = vld [vmem:[%s0 + $0x24] sm:$0xf]
    %v70 = vld [vmem:[%s0 + $0x28] sm:$0xf]
    %v71 = vld [vmem:[%s0 + $0x2c] sm:$0xf]
    %v72 = vld [vmem:[%s0 + $0x30] sm:$0xf]
    %v73 = vld [vmem:[%s0 + $0x34] sm:$0xf]
    %v74 = vld [vmem:[%s0 + $0x38] sm:$0xf]
    %v75 = vld [vmem:[%s0 + $0x3c] sm:$0xf]
    %v76 = vld [vmem:[%s1] sm:$0xf]
    %v77 = vld [vmem:[%s1 + $0x4] sm:$0xf]
    %v78 = vld [vmem:[%s1 + $0x8] sm:$0xf]
    %v79 = vld [vmem:[%s1 + $0xc] sm:$0xf]
    %v80 = vld [vmem:[%s1 + $0x10] sm:$0xf]
    %v81 = vld [vmem:[%s1 + $0x14] sm:$0xf]
    %v82 = vld [vmem:[%s1 + $0x18] sm:$0xf]
    %v83 = vld [vmem:[%s1 + $0x1c] sm:$0xf]
    %v84 = vld [vmem:[%s1 + $0x20] sm:$0xf]
    %v85 = vld [vmem:[%s1 + $0x24] sm:$0xf]
    %v86 = vld [vmem:[%s1 + $0x28] sm:$0xf]
    %v87 = vld [vmem:[%s1 + $0x2c] sm:$0xf]
    %v88 = vld [vmem:[%s1 + $0x30] sm:$0xf]
    %v89 = vld [vmem:[%s1 + $0x34] sm:$0xf]
    %v90 = vld [vmem:[%s1 + $0x38] sm:$0xf]
    %v91 = vld [vmem:[%s1 + $0x3c] sm:$0xf]
    %v108 = vunpack.c.l.b16 %v60
    %v109 = vunpack.c.l.b16 %v61
    %v110 = vunpack.c.l.b16 %v62
    %v111 = vunpack.c.l.b16 %v63
    %v112 = vunpack.c.l.b16 %v64
    %v113 = vunpack.c.l.b16 %v65
    %v114 = vunpack.c.l.b16 %v66
    %v115 = vunpack.c.l.b16 %v67
    %v116 = vunpack.c.l.b16 %v68
    %v117 = vunpack.c.l.b16 %v69
    %v118 = vunpack.c.l.b16 %v70
    %v119 = vunpack.c.l.b16 %v71
    %v120 = vunpack.c.l.b16 %v72
    %v121 = vunpack.c.l.b16 %v73
    %v122 = vunpack.c.l.b16 %v74
    %v123 = vunpack.c.l.b16 %v75
    %v124 = vpack.c.b16 %v109, %v108
    %v125 = vpack.c.b16 %v111, %v110
    %v126 = vpack.c.b16 %v113, %v112
    %v127 = vpack.c.b16 %v115, %v114
    %v128 = vpack.c.b16 %v117, %v116
    %v129 = vpack.c.b16 %v119, %v118
    %v130 = vpack.c.b16 %v121, %v120
    %v131 = vpack.c.b16 %v123, %v122
    %v156 = vunpack.c.l.b16 %v76
    %v157 = vunpack.c.l.b16 %v77
    %v158 = vunpack.c.l.b16 %v78
    %v159 = vunpack.c.l.b16 %v79
    %v160 = vunpack.c.l.b16 %v80
    %v161 = vunpack.c.l.b16 %v81
    %v162 = vunpack.c.l.b16 %v82
    %v163 = vunpack.c.l.b16 %v83
    %v164 = vunpack.c.l.b16 %v84
    %v165 = vunpack.c.l.b16 %v85
    %v166 = vunpack.c.l.b16 %v86
    %v167 = vunpack.c.l.b16 %v87
    %v168 = vunpack.c.l.b16 %v88
    %v169 = vunpack.c.l.b16 %v89
    %v170 = vunpack.c.l.b16 %v90
    %v171 = vunpack.c.l.b16 %v91
    %v172 = vpack.c.b16 %v157, %v156
    %v173 = vpack.c.b16 %v159, %v158
    %v174 = vpack.c.b16 %v161, %v160
    %v175 = vpack.c.b16 %v163, %v162
    %v176 = vpack.c.b16 %v165, %v164
    %v177 = vpack.c.b16 %v167, %v166
    %v178 = vpack.c.b16 %v169, %v168
    %v179 = vpack.c.b16 %v171, %v170
    %188 = vmatpush.bf16.msra.mxu0 %v179
    %189 = vmatpush.bf16.msra.mxu0 %v178
    %190 = vmatpush.bf16.msra.mxu0 %v177
    %191 = vmatpush.bf16.msra.mxu0 %v176
    %192 = vmatpush.bf16.msra.mxu0 %v175
    %193 = vmatpush.bf16.msra.mxu0 %v174
    %194 = vmatpush.bf16.msra.mxu0 %v173
    %195 = vmatpush.bf16.msra.mxu0 %v172
    %196 = vmatmul.bf16.gmra.mxu0 %v124
    %v197 = vpop.f32.mrf.mxu0
    %v198 = vadd.f32 0.0, %v197
    %v199 = vpop.f32.mrf.mxu0
    %v200 = vadd.f32 0.0, %v199
    %201 = vmatmul.bf16.gmra.mxu0 %v125
    %v202 = vpop.f32.mrf.mxu0
    %v203 = vadd.f32 0.0, %v202
    %v204 = vpop.f32.mrf.mxu0
    %v205 = vadd.f32 0.0, %v204
    %206 = vmatmul.bf16.gmra.mxu0 %v126
    %v207 = vpop.f32.mrf.mxu0
    %v208 = vadd.f32 0.0, %v207
    %v209 = vpop.f32.mrf.mxu0
    %v210 = vadd.f32 0.0, %v209
    %211 = vmatmul.bf16.gmra.mxu0 %v127
    %v212 = vpop.f32.mrf.mxu0
    %v213 = vadd.f32 0.0, %v212
    %v214 = vpop.f32.mrf.mxu0
    %v215 = vadd.f32 0.0, %v214
    %216 = vmatmul.bf16.gmra.mxu0 %v128
    %v217 = vpop.f32.mrf.mxu0
    %v218 = vadd.f32 0.0, %v217
    %v219 = vpop.f32.mrf.mxu0
    %v220 = vadd.f32 0.0, %v219
    %221 = vmatmul.bf16.gmra.mxu0 %v129
    %v222 = vpop.f32.mrf.mxu0
    %v223 = vadd.f32 0.0, %v222
    %v224 = vpop.f32.mrf.mxu0
    %v225 = vadd.f32 0.0, %v224
    %226 = vmatmul.bf16.gmra.mxu0 %v130
    %v227 = vpop.f32.mrf.mxu0
    %v228 = vadd.f32 0.0, %v227
    %v229 = vpop.f32.mrf.mxu0
    %v230 = vadd.f32 0.0, %v229
    %231 = vmatmul.bf16.gmra.mxu0 %v131
    %v232 = vpop.f32.mrf.mxu0
    %v233 = vadd.f32 0.0, %v232
    %v234 = vpop.f32.mrf.mxu0
    %v235 = vadd.f32 0.0, %v234
    %236 = vdwg.mxu0
    %v237 = vadd.f32 %v44, %v198
    %v238 = vadd.f32 %v45, %v200
    %v239 = vadd.f32 %v46, %v203
    %v240 = vadd.f32 %v47, %v205
    %v241 = vadd.f32 %v48, %v208
    %v242 = vadd.f32 %v49, %v210
    %v243 = vadd.f32 %v50, %v213
    %v244 = vadd.f32 %v51, %v215
    %v245 = vadd.f32 %v52, %v218
    %v246 = vadd.f32 %v53, %v220
    %v247 = vadd.f32 %v54, %v223
    %v248 = vadd.f32 %v55, %v225
    %v249 = vadd.f32 %v56, %v228
    %v250 = vadd.f32 %v57, %v230
    %v251 = vadd.f32 %v58, %v233
    %v252 = vadd.f32 %v59, %v235
    %253 = vst [vmem:[#allocation2] sm:$0xff] %v237
    %254 = vst [vmem:[#allocation2 + $0x8] sm:$0xff] %v238
    %255 = vst [vmem:[#allocation2 + $0x10] sm:$0xff] %v239
    %256 = vst [vmem:[#allocation2 + $0x18] sm:$0xff] %v240
    %257 = vst [vmem:[#allocation2 + $0x20] sm:$0xff] %v241
    %258 = vst [vmem:[#allocation2 + $0x28] sm:$0xff] %v242
    %259 = vst [vmem:[#allocation2 + $0x30] sm:$0xff] %v243
    %260 = vst [vmem:[#allocation2 + $0x38] sm:$0xff] %v244
    %261 = vst [vmem:[#allocation2 + $0x40] sm:$0xff] %v245
    %262 = vst [vmem:[#allocation2 + $0x48] sm:$0xff] %v246
    %263 = vst [vmem:[#allocation2 + $0x50] sm:$0xff] %v247
    %264 = vst [vmem:[#allocation2 + $0x58] sm:$0xff] %v248
    %265 = vst [vmem:[#allocation2 + $0x60] sm:$0xff] %v249
    %266 = vst [vmem:[#allocation2 + $0x68] sm:$0xff] %v250
    %267 = vst [vmem:[#allocation2 + $0x70] sm:$0xff] %v251
    %268 = vst [vmem:[#allocation2 + $0x78] sm:$0xff] %v252
    // Predicated region
    $region30: #{_forward_impl.3} parent=1 // pred_check
      %p269 = pneg %p24
    $region31: #{_forward_impl.3} parent=1 // pred_check_branch
      %271 = sbr.rel (%p269) target = $region33
    $region32: #{_forward_impl.3} parent=1 // pred_region
      %v272 = vld [vmem:[#allocation2] sm:$0xff]
      %v273 = vld [vmem:[#allocation2 + $0x8] sm:$0xff]
      %v274 = vld [vmem:[#allocation2 + $0x10] sm:$0xff]
      %v275 = vld [vmem:[#allocation2 + $0x18] sm:$0xff]
      %v276 = vld [vmem:[#allocation2 + $0x20] sm:$0xff]
      %v277 = vld [vmem:[#allocation2 + $0x28] sm:$0xff]
      %v278 = vld [vmem:[#allocation2 + $0x30] sm:$0xff]
      %v279 = vld [vmem:[#allocation2 + $0x38] sm:$0xff]
      %v280 = vld [vmem:[#allocation2 + $0x40] sm:$0xff]
      %v281 = vld [vmem:[#allocation2 + $0x48] sm:$0xff]
      %v282 = vld [vmem:[#allocation2 + $0x50] sm:$0xff]
      %v283 = vld [vmem:[#allocation2 + $0x58] sm:$0xff]
      %v284 = vld [vmem:[#allocation2 + $0x60] sm:$0xff]
      %v285 = vld [vmem:[#allocation2 + $0x68] sm:$0xff]
      %v286 = vld [vmem:[#allocation2 + $0x70] sm:$0xff]
      %v287 = vld [vmem:[#allocation2 + $0x78] sm:$0xff]
      %v288 = vld [vmem:[%s3] sm:$0xff]
      %v289 = vld [vmem:[%s3 + $0x8] sm:$0xff]
      %v290 = vld [vmem:[%s3 + $0x10] sm:$0xff]
      %v291 = vld [vmem:[%s3 + $0x18] sm:$0xff]
      %v292 = vld [vmem:[%s3 + $0x20] sm:$0xff]
      %v293 = vld [vmem:[%s3 + $0x28] sm:$0xff]
      %v294 = vld [vmem:[%s3 + $0x30] sm:$0xff]
      %v295 = vld [vmem:[%s3 + $0x38] sm:$0xff]
      %v296 = vld [vmem:[%s3 + $0x40] sm:$0xff]
      %v297 = vld [vmem:[%s3 + $0x48] sm:$0xff]
      %v298 = vld [vmem:[%s3 + $0x50] sm:$0xff]
      %v299 = vld [vmem:[%s3 + $0x58] sm:$0xff]
      %v300 = vld [vmem:[%s3 + $0x60] sm:$0xff]
      %v301 = vld [vmem:[%s3 + $0x68] sm:$0xff]
      %v302 = vld [vmem:[%s3 + $0x70] sm:$0xff]
      %v303 = vld [vmem:[%s3 + $0x78] sm:$0xff]
      %305 = vset.pattern.permute.xlu0 0
      %306 = vperm.xlu0 %305, %v288
      %v307 = vpop.permute.xlu0 %306
      %310 = vset.pattern.permute.xlu0 0
      %311 = vperm.xlu0 %310, %v289
      %v312 = vpop.permute.xlu0 %311
      %315 = vset.pattern.permute.xlu0 0
      %316 = vperm.xlu0 %315, %v290
      %v317 = vpop.permute.xlu0 %316
      %320 = vset.pattern.permute.xlu0 0
      %321 = vperm.xlu0 %320, %v291
      %v322 = vpop.permute.xlu0 %321
      %325 = vset.pattern.permute.xlu0 0
      %326 = vperm.xlu0 %325, %v292
      %v327 = vpop.permute.xlu0 %326
      %330 = vset.pattern.permute.xlu0 0
      %331 = vperm.xlu0 %330, %v293
      %v332 = vpop.permute.xlu0 %331
      %335 = vset.pattern.permute.xlu0 0
      %336 = vperm.xlu0 %335, %v294
      %v337 = vpop.permute.xlu0 %336
      %340 = vset.pattern.permute.xlu0 0
      %341 = vperm.xlu0 %340, %v295
      %v342 = vpop.permute.xlu0 %341
      %345 = vset.pattern.permute.xlu0 0
      %346 = vperm.xlu0 %345, %v296
      %v347 = vpop.permute.xlu0 %346
      %350 = vset.pattern.permute.xlu0 0
      %351 = vperm.xlu0 %350, %v297
      %v352 = vpop.permute.xlu0 %351
      %355 = vset.pattern.permute.xlu0 0
      %356 = vperm.xlu0 %355, %v298
      %v357 = vpop.permute.xlu0 %356
      %360 = vset.pattern.permute.xlu0 0
      %361 = vperm.xlu0 %360, %v299
      %v362 = vpop.permute.xlu0 %361
      %365 = vset.pattern.permute.xlu0 0
      %366 = vperm.xlu0 %365, %v300
      %v367 = vpop.permute.xlu0 %366
      %370 = vset.pattern.permute.xlu0 0
      %371 = vperm.xlu0 %370, %v301
      %v372 = vpop.permute.xlu0 %371
      %375 = vset.pattern.permute.xlu0 0
      %376 = vperm.xlu0 %375, %v302
      %v377 = vpop.permute.xlu0 %376
      %380 = vset.pattern.permute.xlu0 0
      %381 = vperm.xlu0 %380, %v303
      %v382 = vpop.permute.xlu0 %381
      %v384 = vmul.f32 %v272, %v307
      %v385 = vmul.f32 %v273, %v312
      %v386 = vmul.f32 %v274, %v317
      %v387 = vmul.f32 %v275, %v322
      %v388 = vmul.f32 %v276, %v327
      %v389 = vmul.f32 %v277, %v332
      %v390 = vmul.f32 %v278, %v337
      %v391 = vmul.f32 %v279, %v342
      %v392 = vmul.f32 %v280, %v347
      %v393 = vmul.f32 %v281, %v352
      %v394 = vmul.f32 %v282, %v357
      %v395 = vmul.f32 %v283, %v362
      %v396 = vmul.f32 %v284, %v367
      %v397 = vmul.f32 %v285, %v372
      %v398 = vmul.f32 %v286, %v377
      %v399 = vmul.f32 %v287, %v382
      %v400 = vld [vmem:[%s2] sm:$0xf]
      %v401 = vld [vmem:[%s2 + $0x4] sm:$0xf]
      %v402 = vld [vmem:[%s2 + $0x8] sm:$0xf]
      %v403 = vld [vmem:[%s2 + $0xc] sm:$0xf]
      %v404 = vld [vmem:[%s2 + $0x10] sm:$0xf]
      %v405 = vld [vmem:[%s2 + $0x14] sm:$0xf]
      %v406 = vld [vmem:[%s2 + $0x18] sm:$0xf]
      %v407 = vld [vmem:[%s2 + $0x1c] sm:$0xf]
      %v408 = vld [vmem:[%s2 + $0x20] sm:$0xf]
      %v409 = vld [vmem:[%s2 + $0x24] sm:$0xf]
      %v410 = vld [vmem:[%s2 + $0x28] sm:$0xf]
      %v411 = vld [vmem:[%s2 + $0x2c] sm:$0xf]
      %v412 = vld [vmem:[%s2 + $0x30] sm:$0xf]
      %v413 = vld [vmem:[%s2 + $0x34] sm:$0xf]
      %v414 = vld [vmem:[%s2 + $0x38] sm:$0xf]
      %v415 = vld [vmem:[%s2 + $0x3c] sm:$0xf]
      %v416 = vpack.c.bf16 %v384, %v384
      %v417 = vpack.c.bf16 %v385, %v385
      %v418 = vpack.c.bf16 %v386, %v386
      %v419 = vpack.c.bf16 %v387, %v387
      %v420 = vpack.c.bf16 %v388, %v388
      %v421 = vpack.c.bf16 %v389, %v389
      %v422 = vpack.c.bf16 %v390, %v390
      %v423 = vpack.c.bf16 %v391, %v391
      %v424 = vpack.c.bf16 %v392, %v392
      %v425 = vpack.c.bf16 %v393, %v393
      %v426 = vpack.c.bf16 %v394, %v394
      %v427 = vpack.c.bf16 %v395, %v395
      %v428 = vpack.c.bf16 %v396, %v396
      %v429 = vpack.c.bf16 %v397, %v397
      %v430 = vpack.c.bf16 %v398, %v398
      %v431 = vpack.c.bf16 %v399, %v399
      %v448 = vunpack.c.l.b16 %v400
      %v449 = vunpack.c.l.b16 %v401
      %v450 = vunpack.c.l.b16 %v402
      %v451 = vunpack.c.l.b16 %v403
      %v452 = vunpack.c.l.b16 %v404
      %v453 = vunpack.c.l.b16 %v405
      %v454 = vunpack.c.l.b16 %v406
      %v455 = vunpack.c.l.b16 %v407
      %v456 = vunpack.c.l.b16 %v408
      %v457 = vunpack.c.l.b16 %v409
      %v458 = vunpack.c.l.b16 %v410
      %v459 = vunpack.c.l.b16 %v411
      %v460 = vunpack.c.l.b16 %v412
      %v461 = vunpack.c.l.b16 %v413
      %v462 = vunpack.c.l.b16 %v414
      %v463 = vunpack.c.l.b16 %v415
      %v464 = vpack.c.b16 %v449, %v448
      %v465 = vpack.c.b16 %v451, %v450
      %v466 = vpack.c.b16 %v453, %v452
      %v467 = vpack.c.b16 %v455, %v454
      %v468 = vpack.c.b16 %v457, %v456
      %v469 = vpack.c.b16 %v459, %v458
      %v470 = vpack.c.b16 %v461, %v460
      %v471 = vpack.c.b16 %v463, %v462
      %v496 = vunpack.c.l.b16 %v416
      %v497 = vunpack.c.l.b16 %v417
      %v498 = vunpack.c.l.b16 %v418
      %v499 = vunpack.c.l.b16 %v419
      %v500 = vunpack.c.l.b16 %v420
      %v501 = vunpack.c.l.b16 %v421
      %v502 = vunpack.c.l.b16 %v422
      %v503 = vunpack.c.l.b16 %v423
      %v504 = vunpack.c.l.b16 %v424
      %v505 = vunpack.c.l.b16 %v425
      %v506 = vunpack.c.l.b16 %v426
      %v507 = vunpack.c.l.b16 %v427
      %v508 = vunpack.c.l.b16 %v428
      %v509 = vunpack.c.l.b16 %v429
      %v510 = vunpack.c.l.b16 %v430
      %v511 = vunpack.c.l.b16 %v431
      %v512 = vpack.c.b16 %v497, %v496
      %v513 = vpack.c.b16 %v499, %v498
      %v514 = vpack.c.b16 %v501, %v500
      %v515 = vpack.c.b16 %v503, %v502
      %v516 = vpack.c.b16 %v505, %v504
      %v517 = vpack.c.b16 %v507, %v506
      %v518 = vpack.c.b16 %v509, %v508
      %v519 = vpack.c.b16 %v511, %v510
      %v528 = vld [vmem:[%s4] sm:$0xf]
      %v529 = vld [vmem:[%s4 + $0x4] sm:$0xf]
      %v530 = vld [vmem:[%s4 + $0x8] sm:$0xf]
      %v531 = vld [vmem:[%s4 + $0xc] sm:$0xf]
      %v532 = vld [vmem:[%s4 + $0x10] sm:$0xf]
      %v533 = vld [vmem:[%s4 + $0x14] sm:$0xf]
      %v534 = vld [vmem:[%s4 + $0x18] sm:$0xf]
      %v535 = vld [vmem:[%s4 + $0x1c] sm:$0xf]
      %v536 = vld [vmem:[%s4 + $0x20] sm:$0xf]
      %v537 = vld [vmem:[%s4 + $0x24] sm:$0xf]
      %v538 = vld [vmem:[%s4 + $0x28] sm:$0xf]
      %v539 = vld [vmem:[%s4 + $0x2c] sm:$0xf]
      %v540 = vld [vmem:[%s4 + $0x30] sm:$0xf]
      %v541 = vld [vmem:[%s4 + $0x34] sm:$0xf]
      %v542 = vld [vmem:[%s4 + $0x38] sm:$0xf]
      %v543 = vld [vmem:[%s4 + $0x3c] sm:$0xf]
      %v544 = vld [vmem:[%s4 + $0x40] sm:$0xf]
      %v545 = vld [vmem:[%s4 + $0x44] sm:$0xf]
      %v546 = vld [vmem:[%s4 + $0x48] sm:$0xf]
      %v547 = vld [vmem:[%s4 + $0x4c] sm:$0xf]
      %v548 = vld [vmem:[%s4 + $0x50] sm:$0xf]
      %v549 = vld [vmem:[%s4 + $0x54] sm:$0xf]
      %v550 = vld [vmem:[%s4 + $0x58] sm:$0xf]
      %v551 = vld [vmem:[%s4 + $0x5c] sm:$0xf]
      %v552 = vld [vmem:[%s4 + $0x60] sm:$0xf]
      %v553 = vld [vmem:[%s4 + $0x64] sm:$0xf]
      %v554 = vld [vmem:[%s4 + $0x68] sm:$0xf]
      %v555 = vld [vmem:[%s4 + $0x6c] sm:$0xf]
      %v556 = vld [vmem:[%s4 + $0x70] sm:$0xf]
      %v557 = vld [vmem:[%s4 + $0x74] sm:$0xf]
      %v558 = vld [vmem:[%s4 + $0x78] sm:$0xf]
      %v559 = vld [vmem:[%s4 + $0x7c] sm:$0xf]
      %v560 = vld [vmem:[%s5] sm:$0x1]
      %v562 = vperm.slane %v560, 0
      %v596 = vunpack.c.l.b16 %v528
      %v597 = vunpack.c.l.b16 %v529
      %v598 = vunpack.c.l.b16 %v530
      %v599 = vunpack.c.l.b16 %v531
      %v600 = vunpack.c.l.b16 %v532
      %v601 = vunpack.c.l.b16 %v533
      %v602 = vunpack.c.l.b16 %v534
      %v603 = vunpack.c.l.b16 %v535
      %v604 = vunpack.c.l.b16 %v536
      %v605 = vunpack.c.l.b16 %v537
      %v606 = vunpack.c.l.b16 %v538
      %v607 = vunpack.c.l.b16 %v539
      %v608 = vunpack.c.l.b16 %v540
      %v609 = vunpack.c.l.b16 %v541
      %v610 = vunpack.c.l.b16 %v542
      %v611 = vunpack.c.l.b16 %v543
      %v612 = vunpack.c.l.b16 %v544
      %v613 = vunpack.c.l.b16 %v545
      %v614 = vunpack.c.l.b16 %v546
      %v615 = vunpack.c.l.b16 %v547
      %v616 = vunpack.c.l.b16 %v548
      %v617 = vunpack.c.l.b16 %v549
      %v618 = vunpack.c.l.b16 %v550
      %v619 = vunpack.c.l.b16 %v551
      %v620 = vunpack.c.l.b16 %v552
      %v621 = vunpack.c.l.b16 %v553
      %v622 = vunpack.c.l.b16 %v554
      %v623 = vunpack.c.l.b16 %v555
      %v624 = vunpack.c.l.b16 %v556
      %v625 = vunpack.c.l.b16 %v557
      %v626 = vunpack.c.l.b16 %v558
      %v627 = vunpack.c.l.b16 %v559
      %v628 = vpack.c.b16 %v597, %v596
      %v629 = vpack.c.b16 %v599, %v598
      %v630 = vpack.c.b16 %v601, %v600
      %v631 = vpack.c.b16 %v603, %v602
      %v632 = vpack.c.b16 %v605, %v604
      %v633 = vpack.c.b16 %v607, %v606
      %v634 = vpack.c.b16 %v609, %v608
      %v635 = vpack.c.b16 %v611, %v610
      %v636 = vpack.c.b16 %v613, %v612
      %v637 = vpack.c.b16 %v615, %v614
      %v638 = vpack.c.b16 %v617, %v616
      %v639 = vpack.c.b16 %v619, %v618
      %v640 = vpack.c.b16 %v621, %v620
      %v641 = vpack.c.b16 %v623, %v622
      %v642 = vpack.c.b16 %v625, %v624
      %v643 = vpack.c.b16 %v627, %v626
      %660 = vmatpush.bf16.msra.mxu0 %v635
      %661 = vmatpush.bf16.msra.mxu0 %v634
      %662 = vmatpush.bf16.msra.mxu0 %v633
      %663 = vmatpush.bf16.msra.mxu0 %v632
      %664 = vmatpush.bf16.msra.mxu0 %v631
      %665 = vmatpush.bf16.msra.mxu0 %v630
      %666 = vmatpush.bf16.msra.mxu0 %v629
      %667 = vmatpush.bf16.msra.mxu0 %v628
      %668 = vmatmul.bf16.gmra.mxu0 %v464
      %v669 = vpop.f32.mrf.mxu0
      %v670 = vadd.f32 %v562, %v669
      %v671 = vpop.f32.mrf.mxu0
      %v672 = vadd.f32 %v562, %v671
      %673 = vmatmul.bf16.gmra.mxu0 %v465
      %v674 = vpop.f32.mrf.mxu0
      %v675 = vadd.f32 %v562, %v674
      %v676 = vpop.f32.mrf.mxu0
      %v677 = vadd.f32 %v562, %v676
      %678 = vmatmul.bf16.gmra.mxu0 %v466
      %v679 = vpop.f32.mrf.mxu0
      %v680 = vadd.f32 %v562, %v679
      %v681 = vpop.f32.mrf.mxu0
      %v682 = vadd.f32 %v562, %v681
      %683 = vmatmul.bf16.gmra.mxu0 %v467
      %v684 = vpop.f32.mrf.mxu0
      %v685 = vadd.f32 %v562, %v684
      %v686 = vpop.f32.mrf.mxu0
      %v687 = vadd.f32 %v562, %v686
      %688 = vmatmul.bf16.gmra.mxu0 %v468
      %v689 = vpop.f32.mrf.mxu0
      %v690 = vadd.f32 %v562, %v689
      %v691 = vpop.f32.mrf.mxu0
      %v692 = vadd.f32 %v562, %v691
      %693 = vmatmul.bf16.gmra.mxu0 %v469
      %v694 = vpop.f32.mrf.mxu0
      %v695 = vadd.f32 %v562, %v694
      %v696 = vpop.f32.mrf.mxu0
      %v697 = vadd.f32 %v562, %v696
      %698 = vmatmul.bf16.gmra.mxu0 %v470
      %v699 = vpop.f32.mrf.mxu0
      %v700 = vadd.f32 %v562, %v699
      %v701 = vpop.f32.mrf.mxu0
      %v702 = vadd.f32 %v562, %v701
      %703 = vmatmul.bf16.gmra.mxu0 %v471
      %v704 = vpop.f32.mrf.mxu0
      %v705 = vadd.f32 %v562, %v704
      %v706 = vpop.f32.mrf.mxu0
      %v707 = vadd.f32 %v562, %v706
      %708 = vdwg.mxu0
      %709 = vmatpush.bf16.msra.mxu0 %v643
      %710 = vmatpush.bf16.msra.mxu0 %v642
      %711 = vmatpush.bf16.msra.mxu0 %v641
      %712 = vmatpush.bf16.msra.mxu0 %v640
      %713 = vmatpush.bf16.msra.mxu0 %v639
      %714 = vmatpush.bf16.msra.mxu0 %v638
      %715 = vmatpush.bf16.msra.mxu0 %v637
      %716 = vmatpush.bf16.msra.mxu0 %v636
      %717 = vmatmul.bf16.gmra.mxu0 %v512
      %v718 = vpop.f32.mrf.mxu0
      %v719 = vadd.f32 %v670, %v718
      %v720 = vpop.f32.mrf.mxu0
      %v721 = vadd.f32 %v672, %v720
      %722 = vmatmul.bf16.gmra.mxu0 %v513
      %v723 = vpop.f32.mrf.mxu0
      %v724 = vadd.f32 %v675, %v723
      %v725 = vpop.f32.mrf.mxu0
      %v726 = vadd.f32 %v677, %v725
      %727 = vmatmul.bf16.gmra.mxu0 %v514
      %v728 = vpop.f32.mrf.mxu0
      %v729 = vadd.f32 %v680, %v728
      %v730 = vpop.f32.mrf.mxu0
      %v731 = vadd.f32 %v682, %v730
      %732 = vmatmul.bf16.gmra.mxu0 %v515
      %v733 = vpop.f32.mrf.mxu0
      %v734 = vadd.f32 %v685, %v733
      %v735 = vpop.f32.mrf.mxu0
      %v736 = vadd.f32 %v687, %v735
      %737 = vmatmul.bf16.gmra.mxu0 %v516
      %v738 = vpop.f32.mrf.mxu0
      %v739 = vadd.f32 %v690, %v738
      %v740 = vpop.f32.mrf.mxu0
      %v741 = vadd.f32 %v692, %v740
      %742 = vmatmul.bf16.gmra.mxu0 %v517
      %v743 = vpop.f32.mrf.mxu0
      %v744 = vadd.f32 %v695, %v743
      %v745 = vpop.f32.mrf.mxu0
      %v746 = vadd.f32 %v697, %v745
      %747 = vmatmul.bf16.gmra.mxu0 %v518
      %v748 = vpop.f32.mrf.mxu0
      %v749 = vadd.f32 %v700, %v748
      %v750 = vpop.f32.mrf.mxu0
      %v751 = vadd.f32 %v702, %v750
      %752 = vmatmul.bf16.gmra.mxu0 %v519
      %v753 = vpop.f32.mrf.mxu0
      %v754 = vadd.f32 %v705, %v753
      %v755 = vpop.f32.mrf.mxu0
      %v756 = vadd.f32 %v707, %v755
      %757 = vdwg.mxu0
      %v758 = vmax.f32 %v719, 0.0
      %v759 = vmax.f32 %v721, 0.0
      %v760 = vmax.f32 %v724, 0.0
      %v761 = vmax.f32 %v726, 0.0
      %v762 = vmax.f32 %v729, 0.0
      %v763 = vmax.f32 %v731, 0.0
      %v764 = vmax.f32 %v734, 0.0
      %v765 = vmax.f32 %v736, 0.0
      %v766 = vmax.f32 %v739, 0.0
      %v767 = vmax.f32 %v741, 0.0
      %v768 = vmax.f32 %v744, 0.0
      %v769 = vmax.f32 %v746, 0.0
      %v770 = vmax.f32 %v749, 0.0
      %v771 = vmax.f32 %v751, 0.0
      %v772 = vmax.f32 %v754, 0.0
      %v773 = vmax.f32 %v756, 0.0
      %v774 = vmul.f32 %v758, %v758
      %v775 = vmul.f32 %v759, %v759
      %v776 = vmul.f32 %v760, %v760
      %v777 = vmul.f32 %v761, %v761
      %v778 = vmul.f32 %v762, %v762
      %v779 = vmul.f32 %v763, %v763
      %v780 = vmul.f32 %v764, %v764
      %v781 = vmul.f32 %v765, %v765
      %v782 = vmul.f32 %v766, %v766
      %v783 = vmul.f32 %v767, %v767
      %v784 = vmul.f32 %v768, %v768
      %v785 = vmul.f32 %v769, %v769
      %v786 = vmul.f32 %v770, %v770
      %v787 = vmul.f32 %v771, %v771
      %v788 = vmul.f32 %v772, %v772
      %v789 = vmul.f32 %v773, %v773
      %790 = vadd.xlane.f32.xlu0 %v774
      %v791 = vpop.xlane.xlu0 %790
      %792 = vadd.xlane.f32.xlu0 %v775
      %v793 = vpop.xlane.xlu0 %792
      %794 = vadd.xlane.f32.xlu0 %v776
      %v795 = vpop.xlane.xlu0 %794
      %796 = vadd.xlane.f32.xlu0 %v777
      %v797 = vpop.xlane.xlu0 %796
      %798 = vadd.xlane.f32.xlu0 %v778
      %v799 = vpop.xlane.xlu0 %798
      %800 = vadd.xlane.f32.xlu0 %v779
      %v801 = vpop.xlane.xlu0 %800
      %802 = vadd.xlane.f32.xlu0 %v780
      %v803 = vpop.xlane.xlu0 %802
      %804 = vadd.xlane.f32.xlu0 %v781
      %v805 = vpop.xlane.xlu0 %804
      %806 = vadd.xlane.f32.xlu0 %v782
      %v807 = vpop.xlane.xlu0 %806
      %808 = vadd.xlane.f32.xlu0 %v783
      %v809 = vpop.xlane.xlu0 %808
      %810 = vadd.xlane.f32.xlu0 %v784
      %v811 = vpop.xlane.xlu0 %810
      %812 = vadd.xlane.f32.xlu0 %v785
      %v813 = vpop.xlane.xlu0 %812
      %814 = vadd.xlane.f32.xlu0 %v786
      %v815 = vpop.xlane.xlu0 %814
      %816 = vadd.xlane.f32.xlu0 %v787
      %v817 = vpop.xlane.xlu0 %816
      %818 = vadd.xlane.f32.xlu0 %v788
      %v819 = vpop.xlane.xlu0 %818
      %820 = vadd.xlane.f32.xlu0 %v789
      %v821 = vpop.xlane.xlu0 %820
      %v822 = vmax.f32 %v791, 1e-12
      %v823 = vmax.f32 %v793, 1e-12
      %v824 = vmax.f32 %v795, 1e-12
      %v825 = vmax.f32 %v797, 1e-12
      %v826 = vmax.f32 %v799, 1e-12
      %v827 = vmax.f32 %v801, 1e-12
      %v828 = vmax.f32 %v803, 1e-12
      %v829 = vmax.f32 %v805, 1e-12
      %v830 = vmax.f32 %v807, 1e-12
      %v831 = vmax.f32 %v809, 1e-12
      %v832 = vmax.f32 %v811, 1e-12
      %v833 = vmax.f32 %v813, 1e-12
      %v834 = vmax.f32 %v815, 1e-12
      %v835 = vmax.f32 %v817, 1e-12
      %v836 = vmax.f32 %v819, 1e-12
      %v837 = vmax.f32 %v821, 1e-12
      %v838 = vrsqrt.pop %v822
      %v839 = vmul.f32 %v838, %v822
      %v840 = vmul.f32 %v839, %v838
      %v841 = vmul.f32 0.5, %v840
      %v842 = vsub.f32 1.5, %v841
      %v843 = vmul.f32 %v838, %v842
      %vm844 = vweird.f32 %v822
      %vm845 = vweird.f32 %v838
      %vm846 = vmor %vm844, %vm845
      %v847 = vsel %vm846, %v838, %v843
      %v848 = vrsqrt.pop %v823
      %v849 = vmul.f32 %v848, %v823
      %v850 = vmul.f32 %v849, %v848
      %v851 = vmul.f32 0.5, %v850
      %v852 = vsub.f32 1.5, %v851
      %v853 = vmul.f32 %v848, %v852
      %vm854 = vweird.f32 %v823
      %vm855 = vweird.f32 %v848
      %vm856 = vmor %vm854, %vm855
      %v857 = vsel %vm856, %v848, %v853
      %v858 = vrsqrt.pop %v824
      %v859 = vmul.f32 %v858, %v824
      %v860 = vmul.f32 %v859, %v858
      %v861 = vmul.f32 0.5, %v860
      %v862 = vsub.f32 1.5, %v861
      %v863 = vmul.f32 %v858, %v862
      %vm864 = vweird.f32 %v824
      %vm865 = vweird.f32 %v858
      %vm866 = vmor %vm864, %vm865
      %v867 = vsel %vm866, %v858, %v863
      %v868 = vrsqrt.pop %v825
      %v869 = vmul.f32 %v868, %v825
      %v870 = vmul.f32 %v869, %v868
      %v871 = vmul.f32 0.5, %v870
      %v872 = vsub.f32 1.5, %v871
      %v873 = vmul.f32 %v868, %v872
      %vm874 = vweird.f32 %v825
      %vm875 = vweird.f32 %v868
      %vm876 = vmor %vm874, %vm875
      %v877 = vsel %vm876, %v868, %v873
      %v878 = vrsqrt.pop %v826
      %v879 = vmul.f32 %v878, %v826
      %v880 = vmul.f32 %v879, %v878
      %v881 = vmul.f32 0.5, %v880
      %v882 = vsub.f32 1.5, %v881
      %v883 = vmul.f32 %v878, %v882
      %vm884 = vweird.f32 %v826
      %vm885 = vweird.f32 %v878
      %vm886 = vmor %vm884, %vm885
      %v887 = vsel %vm886, %v878, %v883
      %v888 = vrsqrt.pop %v827
      %v889 = vmul.f32 %v888, %v827
      %v890 = vmul.f32 %v889, %v888
      %v891 = vmul.f32 0.5, %v890
      %v892 = vsub.f32 1.5, %v891
      %v893 = vmul.f32 %v888, %v892
      %vm894 = vweird.f32 %v827
      %vm895 = vweird.f32 %v888
      %vm896 = vmor %vm894, %vm895
      %v897 = vsel %vm896, %v888, %v893
      %v898 = vrsqrt.pop %v828
      %v899 = vmul.f32 %v898, %v828
      %v900 = vmul.f32 %v899, %v898
      %v901 = vmul.f32 0.5, %v900
      %v902 = vsub.f32 1.5, %v901
      %v903 = vmul.f32 %v898, %v902
      %vm904 = vweird.f32 %v828
      %vm905 = vweird.f32 %v898
      %vm906 = vmor %vm904, %vm905
      %v907 = vsel %vm906, %v898, %v903
      %v908 = vrsqrt.pop %v829
      %v909 = vmul.f32 %v908, %v829
      %v910 = vmul.f32 %v909, %v908
      %v911 = vmul.f32 0.5, %v910
      %v912 = vsub.f32 1.5, %v911
      %v913 = vmul.f32 %v908, %v912
      %vm914 = vweird.f32 %v829
      %vm915 = vweird.f32 %v908
      %vm916 = vmor %vm914, %vm915
      %v917 = vsel %vm916, %v908, %v913
      %v918 = vrsqrt.pop %v830
      %v919 = vmul.f32 %v918, %v830
      %v920 = vmul.f32 %v919, %v918
      %v921 = vmul.f32 0.5, %v920
      %v922 = vsub.f32 1.5, %v921
      %v923 = vmul.f32 %v918, %v922
      %vm924 = vweird.f32 %v830
      %vm925 = vweird.f32 %v918
      %vm926 = vmor %vm924, %vm925
      %v927 = vsel %vm926, %v918, %v923
      %v928 = vrsqrt.pop %v831
      %v929 = vmul.f32 %v928, %v831
      %v930 = vmul.f32 %v929, %v928
      %v931 = vmul.f32 0.5, %v930
      %v932 = vsub.f32 1.5, %v931
      %v933 = vmul.f32 %v928, %v932
      %vm934 = vweird.f32 %v831
      %vm935 = vweird.f32 %v928
      %vm936 = vmor %vm934, %vm935
      %v937 = vsel %vm936, %v928, %v933
      %v938 = vrsqrt.pop %v832
      %v939 = vmul.f32 %v938, %v832
      %v940 = vmul.f32 %v939, %v938
      %v941 = vmul.f32 0.5, %v940
      %v942 = vsub.f32 1.5, %v941
      %v943 = vmul.f32 %v938, %v942
      %vm944 = vweird.f32 %v832
      %vm945 = vweird.f32 %v938
      %vm946 = vmor %vm944, %vm945
      %v947 = vsel %vm946, %v938, %v943
      %v948 = vrsqrt.pop %v833
      %v949 = vmul.f32 %v948, %v833
      %v950 = vmul.f32 %v949, %v948
      %v951 = vmul.f32 0.5, %v950
      %v952 = vsub.f32 1.5, %v951
      %v953 = vmul.f32 %v948, %v952
      %vm954 = vweird.f32 %v833
      %vm955 = vweird.f32 %v948
      %vm956 = vmor %vm954, %vm955
      %v957 = vsel %vm956, %v948, %v953
      %v958 = vrsqrt.pop %v834
      %v959 = vmul.f32 %v958, %v834
      %v960 = vmul.f32 %v959, %v958
      %v961 = vmul.f32 0.5, %v960
      %v962 = vsub.f32 1.5, %v961
      %v963 = vmul.f32 %v958, %v962
      %vm964 = vweird.f32 %v834
      %vm965 = vweird.f32 %v958
      %vm966 = vmor %vm964, %vm965
      %v967 = vsel %vm966, %v958, %v963
      %v968 = vrsqrt.pop %v835
      %v969 = vmul.f32 %v968, %v835
      %v970 = vmul.f32 %v969, %v968
      %v971 = vmul.f32 0.5, %v970
      %v972 = vsub.f32 1.5, %v971
      %v973 = vmul.f32 %v968, %v972
      %vm974 = vweird.f32 %v835
      %vm975 = vweird.f32 %v968
      %vm976 = vmor %vm974, %vm975
      %v977 = vsel %vm976, %v968, %v973
      %v978 = vrsqrt.pop %v836
      %v979 = vmul.f32 %v978, %v836
      %v980 = vmul.f32 %v979, %v978
      %v981 = vmul.f32 0.5, %v980
      %v982 = vsub.f32 1.5, %v981
      %v983 = vmul.f32 %v978, %v982
      %vm984 = vweird.f32 %v836
      %vm985 = vweird.f32 %v978
      %vm986 = vmor %vm984, %vm985
      %v987 = vsel %vm986, %v978, %v983
      %v988 = vrsqrt.pop %v837
      %v989 = vmul.f32 %v988, %v837
      %v990 = vmul.f32 %v989, %v988
      %v991 = vmul.f32 0.5, %v990
      %v992 = vsub.f32 1.5, %v991
      %v993 = vmul.f32 %v988, %v992
      %vm994 = vweird.f32 %v837
      %vm995 = vweird.f32 %v988
      %vm996 = vmor %vm994, %vm995
      %v997 = vsel %vm996, %v988, %v993
      %v998 = vmul.f32 %v758, %v847
      %v999 = vmul.f32 %v759, %v857
      %v1000 = vmul.f32 %v760, %v867
      %v1001 = vmul.f32 %v761, %v877
      %v1002 = vmul.f32 %v762, %v887
      %v1003 = vmul.f32 %v763, %v897
      %v1004 = vmul.f32 %v764, %v907
      %v1005 = vmul.f32 %v765, %v917
      %v1006 = vmul.f32 %v766, %v927
      %v1007 = vmul.f32 %v767, %v937
      %v1008 = vmul.f32 %v768, %v947
      %v1009 = vmul.f32 %v769, %v957
      %v1010 = vmul.f32 %v770, %v967
      %v1011 = vmul.f32 %v771, %v977
      %v1012 = vmul.f32 %v772, %v987
      %v1013 = vmul.f32 %v773, %v997
      %1014 = vst [vmem:[#allocation3] sm:$0xff] %v998
      %1015 = vst [vmem:[#allocation3 + $0x8] sm:$0xff] %v999
      %1016 = vst [vmem:[#allocation3 + $0x10] sm:$0xff] %v1000
      %1017 = vst [vmem:[#allocation3 + $0x18] sm:$0xff] %v1001
      %1018 = vst [vmem:[#allocation3 + $0x20] sm:$0xff] %v1002
      %1019 = vst [vmem:[#allocation3 + $0x28] sm:$0xff] %v1003
      %1020 = vst [vmem:[#allocation3 + $0x30] sm:$0xff] %v1004
      %1021 = vst [vmem:[#allocation3 + $0x38] sm:$0xff] %v1005
      %1022 = vst [vmem:[#allocation3 + $0x40] sm:$0xff] %v1006
      %1023 = vst [vmem:[#allocation3 + $0x48] sm:$0xff] %v1007
      %1024 = vst [vmem:[#allocation3 + $0x50] sm:$0xff] %v1008
      %1025 = vst [vmem:[#allocation3 + $0x58] sm:$0xff] %v1009
      %1026 = vst [vmem:[#allocation3 + $0x60] sm:$0xff] %v1010
      %1027 = vst [vmem:[#allocation3 + $0x68] sm:$0xff] %v1011
      %1028 = vst [vmem:[#allocation3 + $0x70] sm:$0xff] %v1012
      %1029 = vst [vmem:[#allocation3 + $0x78] sm:$0xff] %v1013
    $region33: #{_forward_impl.3} parent=1 // pred_fallthru
      _
    // Predicated region
    $region34: #{_forward_impl.3} parent=1 // pred_check
      _
    $region35: #{_forward_impl.3} parent=1 // pred_check_branch
      %1031 = sbr.rel (0) target = $region37
    $region36: #{_forward_impl.3} parent=1 // pred_region
      %1033 = vsyncadd [#allocation4], 0
      %s1034 = sshll.u32 [#allocation3], 4
      %s1035 = int_to_ptr.vmem [resolvable:$true] %s1034
      %s1036 = sshll.u32 %s6, 4
      %s1037 = int_to_ptr.hbm [resolvable:$true] %s1036
      %1042 = dma.vmem_to_hbm [thread:$0]  %s1035, 2048, %s1037, [#allocation4], 128, 128, 8
    $region37: #{_forward_impl.3} parent=1 // pred_fallthru
      _
    // Predicated region
    $region38: #{_forward_impl.3} parent=1 // pred_check
      _
    $region39: #{_forward_impl.3} parent=1 // pred_check_branch
      %1044 = sbr.rel (0) target = $region41
    $region40: #{_forward_impl.3} parent=1 // pred_region
      %1046 = dma.done [#allocation4], 2048
    $region41: #{_forward_impl.3} parent=1 // pred_fallthru
      _
    %1047 = vsyncpa [#allocation4], 1

</llo_original>
